<compile_context>
chip_gen: v7x
topology: tpu7x:2x2x1
jax: 0.10.0
libtpu: 0.0.40
codegen_flags: <defaults>
</compile_context>

<pallas_src>
import functools

import numpy as np
import jax
import jax.numpy as jnp
from jax import lax
from jax.experimental import pallas as pl
from jax.experimental.pallas import tpu as pltpu

LANE = 128
SUBLANE = 8
NEG_INF = -1e9
N_EMP = 3
N_RAT = 2


def _round_up(x, m):
    return (x + m - 1) // m * m


# ----------------------------- Pallas kernel ------------------------------ #
def _epitome_kernel(sp_ref, rp_ref, bias_ref, pool_ref,
                    w_sp_ref, w_rp_ref, b_enc_ref,
                    w_rat_ref, w_emp_ref, b_head_ref,
                    rat_out_ref, emp_out_ref, *, scale):
    """One grid step == one EPITOME model (IP/EX/ER); whole batch per step."""
    sp_x = sp_ref[0]                       # (R_sp, H)  bf16
    rp_x = rp_ref[0]                       # (R_rp, H)  bf16
    b_enc = b_enc_ref[0]                   # (2, H)     f32  (row0=b_sp, row1=b_rp)
    b_head = b_head_ref[0]                 # (2, 128)   f32  (row0=b_rat, row1=b_emp)

    # Encoder projections (Linear + ReLU). MXU bf16 operands, f32 accumulation.
    sp_h = jnp.maximum(
        jnp.dot(sp_x, w_sp_ref[0], preferred_element_type=jnp.float32)
        + b_enc[0:1, :], 0.0)              # (R_sp, H) f32
    rp_h = jnp.maximum(
        jnp.dot(rp_x, w_rp_ref[0], preferred_element_type=jnp.float32)
        + b_enc[1:2, :], 0.0)              # (R_rp, H) f32

    sp_hb = sp_h.astype(jnp.bfloat16)
    rp_hb = rp_h.astype(jnp.bfloat16)

    # Cross-attention RP -> SP. Contraction on the last dim of both operands
    # (no transpose materialized). The precomputed bias is block-diagonal over
    # batches and masks SP padding with -1e9.
    scores = lax.dot_general(
        rp_hb, sp_hb, dimension_numbers=(((1,), (1,)), ((), ())),
        preferred_element_type=jnp.float32)                  # (R_rp, R_sp)
    scores = scores * scale + bias_ref[...]

    m = jnp.max(scores, axis=-1, keepdims=True)
    e = jnp.exp(scores - m)
    attn = e * pl.reciprocal(jnp.sum(e, axis=-1, keepdims=True), approx=True)
    ctx = jnp.dot(attn.astype(jnp.bfloat16), sp_hb,
                  preferred_element_type=jnp.float32)        # (R_rp, H)

    comb = rp_h + ctx                                        # (R_rp, H) f32
    comb_b = comb.astype(jnp.bfloat16)

    # Rationale head -> lane-dense (R_rp, 128) slab (cols >= 2 are zero pad).
    rat_out_ref[0] = (jnp.dot(comb_b, w_rat_ref[0],
                              preferred_element_type=jnp.float32)
                      + b_head[0:1, :])

    # Empathy head: masked mean-pool via one matmul with the precomputed
    # (B, R_rp) pooling matrix (f32 for exact means), then lane-dense (B, 128)
    # logit slab.
    pooled = jnp.dot(pool_ref[...], comb,
                     preferred_element_type=jnp.float32)     # (B, H) f32
    emp_out_ref[0] = (jnp.dot(pooled.astype(jnp.bfloat16), w_emp_ref[0],
                              preferred_element_type=jnp.float32)
                      + b_head[1:2, :])


# ------------------------------- wrapper ----------------------------------- #
def epitome_forward_fused(stacked, sp_emb, rp_emb, sp_mask, rp_mask):
    """Runs all three bi-encoder models in one pallas_call.

    sp_emb/rp_emb: (3, B, Ts/Tr, hidden) f32 per-model token embeddings.
    sp_mask/rp_mask: (B, Ts/Tr) f32 attention masks.
    Returns (emp_logits (3, B, 3), rat_logits (3, B, Tr, 2))."""
    M, B, Ts, hidden = sp_emb.shape
    Tr = rp_emb.shape[2]
    H = stacked["w_sp"].shape[-1]               # lane-padded hidden
    R_sp = _round_up(B * Ts, SUBLANE)
    R_rp = _round_up(B * Tr, SUBLANE)

    def flat_pad(x, rows):
        # (M, B, T, hidden) -> (M, rows, H) bf16 with batch folded into rows.
        x = x.reshape(M, -1, hidden)
        x = jnp.pad(x, ((0, 0), (0, rows - x.shape[1]), (0, H - hidden)))
        return x.astype(jnp.bfloat16)

    sp_x = flat_pad(sp_emb, R_sp)
    rp_x = flat_pad(rp_emb, R_rp)

    # Block-diagonal additive attention bias (masks SP pads + cross-batch).
    sp_batch = jnp.repeat(jnp.arange(B), Ts)
    rp_batch = jnp.repeat(jnp.arange(B), Tr)
    sp_valid = sp_mask.reshape(B * Ts) > 0.5
    bias = jnp.where(
        (rp_batch[:, None] == sp_batch[None, :]) & sp_valid[None, :],
        0.0, NEG_INF).astype(jnp.float32)
    bias = jnp.pad(bias, ((0, R_rp - B * Tr), (0, R_sp - B * Ts)),
                   constant_values=NEG_INF)

    # Pooling matrix: row b = normalized rp_mask of batch b, zeros elsewhere.
    denom = jnp.maximum(jnp.sum(rp_mask, axis=1, keepdims=True), 1.0)
    pool = ((jnp.arange(B)[:, None] == rp_batch[None, :]).astype(jnp.float32)
            * (rp_mask / denom).reshape(-1)[None, :])
    pool = jnp.pad(pool, ((0, 0), (0, R_rp - B * Tr)))

    scale = 1.0 / float(np.sqrt(hidden))
    kernel = functools.partial(_epitome_kernel, scale=scale)

    grid_spec = pltpu.PrefetchScalarGridSpec(
        num_scalar_prefetch=0,
        grid=(M,),
        in_specs=[
            pl.BlockSpec((1, R_sp, H), lambda m: (m, 0, 0)),     # sp activations
            pl.BlockSpec((1, R_rp, H), lambda m: (m, 0, 0)),     # rp activations
            pl.BlockSpec((R_rp, R_sp), lambda m: (0, 0)),        # attn bias (shared)
            pl.BlockSpec((B, R_rp), lambda m: (0, 0)),           # pooling matrix
            pl.BlockSpec((1, H, H), lambda m: (m, 0, 0)),        # w_sp
            pl.BlockSpec((1, H, H), lambda m: (m, 0, 0)),        # w_rp
            pl.BlockSpec((1, 2, H), lambda m: (m, 0, 0)),        # encoder biases
            pl.BlockSpec((1, H, LANE), lambda m: (m, 0, 0)),     # w_rat (lane-padded)
            pl.BlockSpec((1, H, LANE), lambda m: (m, 0, 0)),     # w_emp (lane-padded)
            pl.BlockSpec((1, 2, LANE), lambda m: (m, 0, 0)),     # head biases
        ],
        out_specs=(
            pl.BlockSpec((1, R_rp, LANE), lambda m: (m, 0, 0)),  # rationale slab
            pl.BlockSpec((1, B, LANE), lambda m: (m, 0, 0)),     # empathy slab
        ),
    )

    rat_slab, emp_slab = pl.pallas_call(
        kernel,
        out_shape=(jax.ShapeDtypeStruct((M, R_rp, LANE), jnp.float32),
                   jax.ShapeDtypeStruct((M, B, LANE), jnp.float32)),
        grid_spec=grid_spec,
        compiler_params=pltpu.CompilerParams(
            dimension_semantics=("parallel",)),
    )(sp_x, rp_x, bias, pool,
      stacked["w_sp"], stacked["w_rp"], stacked["b_enc"],
      stacked["w_rat"], stacked["w_emp"], stacked["b_head"])

    rat_logits = rat_slab[:, :B * Tr, :N_RAT].reshape(M, B, Tr, N_RAT)
    emp_logits = emp_slab[:, :, :N_EMP]
    return emp_logits, rat_logits


@jax.jit
def _device_forward(stacked, seeker_ids, seeker_mask, response_ids, response_mask):
    # Embedding lookup = glue (plain JAX gather), one per model via the
    # stacked (3, V, hidden) table.
    sp_emb = jnp.take(stacked["embed"], seeker_ids, axis=1)     # (3, B, Ts, h)
    rp_emb = jnp.take(stacked["embed"], response_ids, axis=1)   # (3, B, Tr, h)
    emp_logits, rat_logits = epitome_forward_fused(
        stacked, sp_emb, rp_emb,
        seeker_mask.astype(jnp.float32), response_mask.astype(jnp.float32))
    emp_probs = jax.nn.softmax(emp_logits, axis=-1)             # like F.softmax
    emp_preds = jnp.argmax(emp_probs, axis=-1)
    rat_preds = jnp.argmax(rat_logits, axis=-1)
    return emp_probs, emp_preds, rat_logits, rat_preds


# ----------------------------- parameter init ----------------------------- #
def init_model_params(key, vocab, hidden, n_emp=N_EMP, n_rat=N_RAT):
    ks = jax.random.split(key, 5)
    s = 0.05
    return {
        "embed": jax.random.normal(ks[0], (vocab, hidden), jnp.float32) * s,
        "w_sp":  jax.random.normal(ks[1], (hidden, hidden), jnp.float32) * s,
        "b_sp":  jnp.zeros((hidden,), jnp.float32),
        "w_rp":  jax.random.normal(ks[2], (hidden, hidden), jnp.float32) * s,
        "b_rp":  jnp.zeros((hidden,), jnp.float32),
        "w_rat": jax.random.normal(ks[3], (hidden, n_rat), jnp.float32) * s,
        "b_rat": jnp.zeros((n_rat,), jnp.float32),
        "w_emp": jax.random.normal(ks[4], (hidden, n_emp), jnp.float32) * s,
        "b_emp": jnp.zeros((n_emp,), jnp.float32),
    }


def stack_and_pad(params_list, hidden):
    """Stack IP/EX/ER params on a leading model axis, pad to lane-dense shapes,
    and cast MXU operands (weights) to bf16."""
    H = _round_up(hidden, LANE)

    def pad2(w, rows, cols):
        return jnp.pad(w, ((0, rows - w.shape[0]), (0, cols - w.shape[1])))

    def pad1(b, cols):
        return jnp.pad(b, ((0, cols - b.shape[0]),))

    w_sp = jnp.stack([pad2(p["w_sp"], H, H) for p in params_list]).astype(jnp.bfloat16)
    w_rp = jnp.stack([pad2(p["w_rp"], H, H) for p in params_list]).astype(jnp.bfloat16)
    b_enc = jnp.stack([jnp.stack([pad1(p["b_sp"], H), pad1(p["b_rp"], H)])
                       for p in params_list]).astype(jnp.float32)
    w_rat = jnp.stack([pad2(p["w_rat"], H, LANE) for p in params_list]).astype(jnp.bfloat16)
    w_emp = jnp.stack([pad2(p["w_emp"], H, LANE) for p in params_list]).astype(jnp.bfloat16)
    b_head = jnp.stack([jnp.stack([pad1(p["b_rat"], LANE), pad1(p["b_emp"], LANE)])
                        for p in params_list]).astype(jnp.float32)
    embed = jnp.stack([p["embed"] for p in params_list])   # (3, V, hidden) f32
    return {"w_sp": w_sp, "w_rp": w_rp, "b_enc": b_enc,
            "w_rat": w_rat, "w_emp": w_emp, "b_head": b_head,
            "embed": embed}


class EmpathyScorerPallas:
    """Synthetic JAX/Pallas analogue of EmpathyScorer (IP / EX / ER models)."""

    MODEL_NAMES = ("IP", "EX", "ER")

    def __init__(self, vocab=64, hidden=128, seed=0):
        self.vocab = vocab
        self.hidden = hidden
        root = jax.random.PRNGKey(seed)
        keys = jax.random.split(root, 3)
        per_model = [init_model_params(k, vocab, hidden) for k in keys]
        self.stacked = stack_and_pad(per_model, hidden)

    # TODO(synk): the RoBERTa tokenizer / pretrained EPITOME checkpoints have
    # no Pallas equivalent; inputs are pre-tokenized integer ids + attention
    # masks and the three bi-encoders use compact synthetic weights.
    def forward(self, seeker_ids, seeker_mask, response_ids, response_mask):
        outs = _device_forward(self.stacked, seeker_ids, seeker_mask,
                               response_ids, response_mask)
        emp_probs, emp_preds, _rat_logits, rat_preds = jax.block_until_ready(outs)
        emp_probs = np.asarray(emp_probs)
        emp_preds = np.asarray(emp_preds)
        rat_preds = np.asarray(rat_preds)
        results = {}
        for i, name in enumerate(self.MODEL_NAMES):
            results[name] = (emp_preds[i].tolist(), emp_probs[i], rat_preds[i])
        return results


# --------------------------------- main ----------------------------------- #
if __name__ == "__main__":
    B, Ts, Tr, H, V = 2, 8, 8, 128, 64

    key = jax.random.PRNGKey(0)
    k1, k2 = jax.random.split(key)
    seeker_ids = jax.random.randint(k1, (B, Ts), 0, V, dtype=jnp.int32)
    response_ids = jax.random.randint(k2, (B, Tr), 0, V, dtype=jnp.int32)

    # Deterministic attention masks (variable "lengths").
    seeker_lens = jnp.array([8, 5], dtype=jnp.int32)
    response_lens = jnp.array([8, 6], dtype=jnp.int32)
    seeker_mask = (jnp.arange(Ts)[None, :] < seeker_lens[:, None]).astype(jnp.float32)
    response_mask = (jnp.arange(Tr)[None, :] < response_lens[:, None]).astype(jnp.float32)

    scorer = EmpathyScorerPallas(vocab=V, hidden=H, seed=0)
    out = scorer.forward(seeker_ids, seeker_mask, response_ids, response_mask)

    # Sanity checks on shapes / semantics.
    for name in ("IP", "EX", "ER"):
        emp_preds, emp_probs, rat_preds = out[name]
        assert emp_probs.shape == (B, 3)
        assert np.allclose(emp_probs.sum(axis=1), 1.0, atol=1e-5)
        assert len(emp_preds) == B
        assert rat_preds.shape == (B, Tr)
        assert np.all((np.asarray(emp_preds) >= 0) & (np.asarray(emp_preds) < 3))
        assert np.all((rat_preds >= 0) & (rat_preds < 2))

    print("KERNEL_OK")
</pallas_src>

<mosaic_0001>
module attributes {stable_mosaic.version = 11 : i64} {
  func.func @_epitome_kernel(%arg0: i32, %arg1: memref<1x16x128xbf16, #tpu.memory_space<vmem>>, %arg2: memref<1x16x128xbf16, #tpu.memory_space<vmem>>, %arg3: memref<16x16xf32, #tpu.memory_space<vmem>>, %arg4: memref<2x16xf32, #tpu.memory_space<vmem>>, %arg5: memref<1x128x128xbf16, #tpu.memory_space<vmem>>, %arg6: memref<1x128x128xbf16, #tpu.memory_space<vmem>>, %arg7: memref<1x2x128xf32, #tpu.memory_space<vmem>>, %arg8: memref<1x128x128xbf16, #tpu.memory_space<vmem>>, %arg9: memref<1x128x128xbf16, #tpu.memory_space<vmem>>, %arg10: memref<1x2x128xf32, #tpu.memory_space<vmem>>, %arg11: memref<1x16x128xf32, #tpu.memory_space<vmem>>, %arg12: memref<1x2x128xf32, #tpu.memory_space<vmem>>) attributes {dimension_semantics = [#tpu.dimension_semantics<parallel>], iteration_bounds = array<i64: 3>, scalar_prefetch = 0 : i64, scratch_operands = 0 : i64, tpu.core_type = #tpu.core_type<tc>, window_params = [{transform_indices = @transform_0, window_bounds = array<i64: 1, 16, 128>}, {transform_indices = @transform_1, window_bounds = array<i64: 1, 16, 128>}, {pipeline_mode = #tpu.pipeline_mode<synchronous>, transform_indices = @transform_2, window_bounds = array<i64: 16, 16>}, {pipeline_mode = #tpu.pipeline_mode<synchronous>, transform_indices = @transform_3, window_bounds = array<i64: 2, 16>}, {transform_indices = @transform_4, window_bounds = array<i64: 1, 128, 128>}, {transform_indices = @transform_5, window_bounds = array<i64: 1, 128, 128>}, {transform_indices = @transform_6, window_bounds = array<i64: 1, 2, 128>}, {transform_indices = @transform_7, window_bounds = array<i64: 1, 128, 128>}, {transform_indices = @transform_8, window_bounds = array<i64: 1, 128, 128>}, {transform_indices = @transform_9, window_bounds = array<i64: 1, 2, 128>}, {transform_indices = @transform_10, window_bounds = array<i64: 1, 16, 128>}, {transform_indices = @transform_11, window_bounds = array<i64: 1, 2, 128>}]} {
    %c0 = arith.constant 0 : index
    %c0_0 = arith.constant 0 : index
    %c0_1 = arith.constant 0 : index
    %0 = vector.load %arg1[%c0, %c0_0, %c0_1] : memref<1x16x128xbf16, #tpu.memory_space<vmem>>, vector<1x16x128xbf16>
    %1 = vector.shape_cast %0 : vector<1x16x128xbf16> to vector<16x128xbf16>
    %c0_2 = arith.constant 0 : index
    %c0_3 = arith.constant 0 : index
    %c0_4 = arith.constant 0 : index
    %2 = vector.load %arg2[%c0_2, %c0_3, %c0_4] : memref<1x16x128xbf16, #tpu.memory_space<vmem>>, vector<1x16x128xbf16>
    %3 = vector.shape_cast %2 : vector<1x16x128xbf16> to vector<16x128xbf16>
    %c0_5 = arith.constant 0 : index
    %c0_6 = arith.constant 0 : index
    %c0_7 = arith.constant 0 : index
    %4 = vector.load %arg7[%c0_5, %c0_6, %c0_7] : memref<1x2x128xf32, #tpu.memory_space<vmem>>, vector<1x2x128xf32>
    %5 = vector.shape_cast %4 : vector<1x2x128xf32> to vector<2x128xf32>
    %c0_8 = arith.constant 0 : index
    %c0_9 = arith.constant 0 : index
    %c0_10 = arith.constant 0 : index
    %6 = vector.load %arg10[%c0_8, %c0_9, %c0_10] : memref<1x2x128xf32, #tpu.memory_space<vmem>>, vector<1x2x128xf32>
    %7 = vector.shape_cast %6 : vector<1x2x128xf32> to vector<2x128xf32>
    %c0_11 = arith.constant 0 : index
    %c0_12 = arith.constant 0 : index
    %c0_13 = arith.constant 0 : index
    %8 = vector.load %arg5[%c0_11, %c0_12, %c0_13] : memref<1x128x128xbf16, #tpu.memory_space<vmem>>, vector<1x128x128xbf16>
    %9 = vector.shape_cast %8 : vector<1x128x128xbf16> to vector<128x128xbf16>
    %cst = arith.constant dense<0.000000e+00> : vector<16x128xf32>
    %10 = tpu.matmul %1, %9, %cst {dimension_numbers = #tpu.dot_dimension_numbers<[1], [0], [0], [1], [0, 0, 1, 1], [], []>} : vector<16x128xbf16>, vector<128x128xbf16>, vector<16x128xf32> -> vector<16x128xf32>
    %11 = vector.extract_strided_slice %5 {offsets = [0, 0], sizes = [1, 128], strides = [1, 1]} : vector<2x128xf32> to vector<1x128xf32>
    %12 = vector.broadcast %11 : vector<1x128xf32> to vector<16x128xf32>
    %13 = arith.addf %10, %12 : vector<16x128xf32>
    %cst_14 = arith.constant 0.000000e+00 : f32
    %14 = vector.broadcast %cst_14 : f32 to vector<16x128xf32>
    %15 = arith.maximumf %13, %14 : vector<16x128xf32>
    %c0_15 = arith.constant 0 : index
    %c0_16 = arith.constant 0 : index
    %c0_17 = arith.constant 0 : index
    %16 = vector.load %arg6[%c0_15, %c0_16, %c0_17] : memref<1x128x128xbf16, #tpu.memory_space<vmem>>, vector<1x128x128xbf16>
    %17 = vector.shape_cast %16 : vector<1x128x128xbf16> to vector<128x128xbf16>
    %cst_18 = arith.constant dense<0.000000e+00> : vector<16x128xf32>
    %18 = tpu.matmul %3, %17, %cst_18 {dimension_numbers = #tpu.dot_dimension_numbers<[1], [0], [0], [1], [0, 0, 1, 1], [], []>} : vector<16x128xbf16>, vector<128x128xbf16>, vector<16x128xf32> -> vector<16x128xf32>
    %19 = vector.extract_strided_slice %5 {offsets = [1, 0], sizes = [1, 128], strides = [1, 1]} : vector<2x128xf32> to vector<1x128xf32>
    %20 = vector.broadcast %19 : vector<1x128xf32> to vector<16x128xf32>
    %21 = arith.addf %18, %20 : vector<16x128xf32>
    %cst_19 = arith.constant 0.000000e+00 : f32
    %22 = vector.broadcast %cst_19 : f32 to vector<16x128xf32>
    %23 = arith.maximumf %21, %22 : vector<16x128xf32>
    %24 = arith.truncf %15 : vector<16x128xf32> to vector<16x128xbf16>
    %25 = arith.truncf %23 : vector<16x128xf32> to vector<16x128xbf16>
    %cst_20 = arith.constant dense<0.000000e+00> : vector<16x16xf32>
    %26 = tpu.matmul %25, %24, %cst_20 {dimension_numbers = #tpu.dot_dimension_numbers<[1], [1], [0], [0], [0, 0, 1, 0], [], []>} : vector<16x128xbf16>, vector<16x128xbf16>, vector<16x16xf32> -> vector<16x16xf32>
    %cst_21 = arith.constant 0.0883883461 : f32
    %27 = vector.broadcast %cst_21 : f32 to vector<16x16xf32>
    %28 = arith.mulf %26, %27 : vector<16x16xf32>
    %c0_22 = arith.constant 0 : index
    %c0_23 = arith.constant 0 : index
    %29 = vector.load %arg3[%c0_22, %c0_23] : memref<16x16xf32, #tpu.memory_space<vmem>>, vector<16x16xf32>
    %30 = arith.addf %28, %29 : vector<16x16xf32>
    %cst_24 = arith.constant dense<0xFF800000> : vector<16xf32>
    %31 = vector.multi_reduction <maximumf>, %30, %cst_24 [1] : vector<16x16xf32> to vector<16xf32>
    %32 = vector.shape_cast %31 : vector<16xf32> to vector<16x1xf32>
    %33 = vector.broadcast %32 : vector<16x1xf32> to vector<16x16xf32>
    %34 = arith.subf %30, %33 : vector<16x16xf32>
    %35 = math.exp %34 : vector<16x16xf32>
    %cst_25 = arith.constant dense<0.000000e+00> : vector<16xf32>
    %36 = vector.multi_reduction <add>, %35, %cst_25 [1] : vector<16x16xf32> to vector<16xf32>
    %37 = vector.shape_cast %36 : vector<16xf32> to vector<16x1xf32>
    %38 = tpu.reciprocal %37 {approx = true} : vector<16x1xf32> -> vector<16x1xf32>
    %39 = vector.broadcast %38 : vector<16x1xf32> to vector<16x16xf32>
    %40 = arith.mulf %35, %39 : vector<16x16xf32>
    %41 = arith.truncf %40 : vector<16x16xf32> to vector<16x16xbf16>
    %cst_26 = arith.constant dense<0.000000e+00> : vector<16x128xf32>
    %42 = tpu.matmul %41, %24, %cst_26 {dimension_numbers = #tpu.dot_dimension_numbers<[1], [0], [0], [1], [0, 0, 1, 1], [], []>} : vector<16x16xbf16>, vector<16x128xbf16>, vector<16x128xf32> -> vector<16x128xf32>
    %43 = arith.addf %23, %42 : vector<16x128xf32>
    %44 = arith.truncf %43 : vector<16x128xf32> to vector<16x128xbf16>
    %c0_27 = arith.constant 0 : index
    %c0_28 = arith.constant 0 : index
    %c0_29 = arith.constant 0 : index
    %45 = vector.load %arg8[%c0_27, %c0_28, %c0_29] : memref<1x128x128xbf16, #tpu.memory_space<vmem>>, vector<1x128x128xbf16>
    %46 = vector.shape_cast %45 : vector<1x128x128xbf16> to vector<128x128xbf16>
    %cst_30 = arith.constant dense<0.000000e+00> : vector<16x128xf32>
    %47 = tpu.matmul %44, %46, %cst_30 {dimension_numbers = #tpu.dot_dimension_numbers<[1], [0], [0], [1], [0, 0, 1, 1], [], []>} : vector<16x128xbf16>, vector<128x128xbf16>, vector<16x128xf32> -> vector<16x128xf32>
    %48 = vector.extract_strided_slice %7 {offsets = [0, 0], sizes = [1, 128], strides = [1, 1]} : vector<2x128xf32> to vector<1x128xf32>
    %49 = vector.broadcast %48 : vector<1x128xf32> to vector<16x128xf32>
    %50 = arith.addf %47, %49 : vector<16x128xf32>
    %c0_31 = arith.constant 0 : index
    %c0_32 = arith.constant 0 : index
    %c0_33 = arith.constant 0 : index
    %51 = vector.load %arg11[%c0_31, %c0_32, %c0_33] : memref<1x16x128xf32, #tpu.memory_space<vmem>>, vector<1x16x128xf32>
    %52 = vector.shape_cast %51 : vector<1x16x128xf32> to vector<16x128xf32>
    %53 = vector.shape_cast %50 : vector<16x128xf32> to vector<1x16x128xf32>
    tpu.vector_store %arg11[%c0_31, %c0_32, %c0_33], %53 {strides = array<i32>} : memref<1x16x128xf32, #tpu.memory_space<vmem>>, vector<1x16x128xf32>,
    %c0_34 = arith.constant 0 : index
    %c0_35 = arith.constant 0 : index
    %54 = vector.load %arg4[%c0_34, %c0_35] : memref<2x16xf32, #tpu.memory_space<vmem>>, vector<2x16xf32>
    %cst_36 = arith.constant dense<0.000000e+00> : vector<2x128xf32>
    %55 = tpu.matmul %54, %43, %cst_36 {dimension_numbers = #tpu.dot_dimension_numbers<[1], [0], [0], [1], [0, 0, 1, 1], [], []>} : vector<2x16xf32>, vector<16x128xf32>, vector<2x128xf32> -> vector<2x128xf32>
    %56 = arith.truncf %55 : vector<2x128xf32> to vector<2x128xbf16>
    %c0_37 = arith.constant 0 : index
    %c0_38 = arith.constant 0 : index
    %c0_39 = arith.constant 0 : index
    %57 = vector.load %arg9[%c0_37, %c0_38, %c0_39] : memref<1x128x128xbf16, #tpu.memory_space<vmem>>, vector<1x128x128xbf16>
    %58 = vector.shape_cast %57 : vector<1x128x128xbf16> to vector<128x128xbf16>
    %cst_40 = arith.constant dense<0.000000e+00> : vector<2x128xf32>
    %59 = tpu.matmul %56, %58, %cst_40 {dimension_numbers = #tpu.dot_dimension_numbers<[1], [0], [0], [1], [0, 0, 1, 1], [], []>} : vector<2x128xbf16>, vector<128x128xbf16>, vector<2x128xf32> -> vector<2x128xf32>
    %60 = vector.extract_strided_slice %7 {offsets = [1, 0], sizes = [1, 128], strides = [1, 1]} : vector<2x128xf32> to vector<1x128xf32>
    %61 = vector.broadcast %60 : vector<1x128xf32> to vector<2x128xf32>
    %62 = arith.addf %59, %61 : vector<2x128xf32>
    %c0_41 = arith.constant 0 : index
    %c0_42 = arith.constant 0 : index
    %c0_43 = arith.constant 0 : index
    %63 = vector.load %arg12[%c0_41, %c0_42, %c0_43] : memref<1x2x128xf32, #tpu.memory_space<vmem>>, vector<1x2x128xf32>
    %64 = vector.shape_cast %63 : vector<1x2x128xf32> to vector<2x128xf32>
    %65 = vector.shape_cast %62 : vector<2x128xf32> to vector<1x2x128xf32>
    tpu.vector_store %arg12[%c0_41, %c0_42, %c0_43], %65 {strides = array<i32>} : memref<1x2x128xf32, #tpu.memory_space<vmem>>, vector<1x2x128xf32>,
    return
  }
  func.func @transform_0(%arg0: i32) -> (i32, i32, i32) {
    %c0_i32 = arith.constant 0 : i32
    %c0_i32_0 = arith.constant 0 : i32
    %c0_i32_1 = arith.constant 0 : i32
    return %arg0, %c0_i32, %c0_i32_0 : i32, i32, i32
  }
  func.func @transform_1(%arg0: i32) -> (i32, i32, i32) {
    %c0_i32 = arith.constant 0 : i32
    %c0_i32_0 = arith.constant 0 : i32
    %c0_i32_1 = arith.constant 0 : i32
    return %arg0, %c0_i32, %c0_i32_0 : i32, i32, i32
  }
  func.func @transform_2(%arg0: i32) -> (i32, i32) {
    %c0_i32 = arith.constant 0 : i32
    %c0_i32_0 = arith.constant 0 : i32
    %c0_i32_1 = arith.constant 0 : i32
    return %c0_i32, %c0_i32_0 : i32, i32
  }
  func.func @transform_3(%arg0: i32) -> (i32, i32) {
    %c0_i32 = arith.constant 0 : i32
    %c0_i32_0 = arith.constant 0 : i32
    %c0_i32_1 = arith.constant 0 : i32
    return %c0_i32, %c0_i32_0 : i32, i32
  }
  func.func @transform_4(%arg0: i32) -> (i32, i32, i32) {
    %c0_i32 = arith.constant 0 : i32
    %c0_i32_0 = arith.constant 0 : i32
    %c0_i32_1 = arith.constant 0 : i32
    return %arg0, %c0_i32, %c0_i32_0 : i32, i32, i32
  }
  func.func @transform_5(%arg0: i32) -> (i32, i32, i32) {
    %c0_i32 = arith.constant 0 : i32
    %c0_i32_0 = arith.constant 0 : i32
    %c0_i32_1 = arith.constant 0 : i32
    return %arg0, %c0_i32, %c0_i32_0 : i32, i32, i32
  }
  func.func @transform_6(%arg0: i32) -> (i32, i32, i32) {
    %c0_i32 = arith.constant 0 : i32
    %c0_i32_0 = arith.constant 0 : i32
    %c0_i32_1 = arith.constant 0 : i32
    return %arg0, %c0_i32, %c0_i32_0 : i32, i32, i32
  }
  func.func @transform_7(%arg0: i32) -> (i32, i32, i32) {
    %c0_i32 = arith.constant 0 : i32
    %c0_i32_0 = arith.constant 0 : i32
    %c0_i32_1 = arith.constant 0 : i32
    return %arg0, %c0_i32, %c0_i32_0 : i32, i32, i32
  }
  func.func @transform_8(%arg0: i32) -> (i32, i32, i32) {
    %c0_i32 = arith.constant 0 : i32
    %c0_i32_0 = arith.constant 0 : i32
    %c0_i32_1 = arith.constant 0 : i32
    return %arg0, %c0_i32, %c0_i32_0 : i32, i32, i32
  }
  func.func @transform_9(%arg0: i32) -> (i32, i32, i32) {
    %c0_i32 = arith.constant 0 : i32
    %c0_i32_0 = arith.constant 0 : i32
    %c0_i32_1 = arith.constant 0 : i32
    return %arg0, %c0_i32, %c0_i32_0 : i32, i32, i32
  }
  func.func @transform_10(%arg0: i32) -> (i32, i32, i32) {
    %c0_i32 = arith.constant 0 : i32
    %c0_i32_0 = arith.constant 0 : i32
    %c0_i32_1 = arith.constant 0 : i32
    return %arg0, %c0_i32, %c0_i32_0 : i32, i32, i32
  }
  func.func @transform_11(%arg0: i32) -> (i32, i32, i32) {
    %c0_i32 = arith.constant 0 : i32
    %c0_i32_0 = arith.constant 0 : i32
    %c0_i32_1 = arith.constant 0 : i32
    return %arg0, %c0_i32, %c0_i32_0 : i32, i32, i32
  }
}

</mosaic_0001>

<llo_original>
// kernel: mul.5
$region0: #{mul.5}
  %s0 = inlined_call_operand.vmem [shape: f32[2,8], index: 0, kind: input, shape index: {}]
  %s1 = inlined_call_operand.vmem [shape: f32[16], index: 1, kind: output, shape index: {}]
  $region1: #{mul.5} parent=0
    #allocation0 [shape = 'u8[4096]{0}', space=vmem, size = 0x1000, scoped, tag = 'scoped mem for output reshape']
    #allocation1 [shape = 'u8[4096]{0}', space=vmem, size = 0x1000, scoped, tag = 'scoped mem for input reshape']
    %s3 = sshllo.u32 0, 2
    %v4 = vld [vmem:[%s0] sm:%s3]
    %5 = vst [vmem:[#allocation1] sm:%s3] %v4
    %v6 = vld [vmem:[#allocation1] sm:$0x1]
    %vm7 = vcmask 64512
    %8 = vst.msk [vmem:[#allocation0] sm:$0x1] %vm7, %v6
    %s9 = scalar_lea.vmem [#allocation1], 1
    %v10 = vld [vmem:[%s9] sm:$0x1]
    %11 = vrot.lane.b32.xlu0 %v10, 8
    %v12 = vpop.permute.xlu0 %11
    %vm13 = vcmask 130112
    %14 = vst.msk [vmem:[#allocation0] sm:$0x1] %vm13, %v12
    %s16 = sshllo.u32 0, 1
    %v18 = vld [vmem:[#allocation0] sm:%s16]
    %s19 = sshllo.u32 0, 1
    %20 = vst [vmem:[%s1] sm:%s19] %v18

// kernel: _device_forward.1
$region0: #{_device_forward.1}
  #allocation0 [shape = 'u32[]', space=smem, size = 0x4, offset = 0x4, fixed_abs, tag = 'smem constant byte address 0x4 - core index']
  #allocation1 [shape = 'u32[144,128]{1,0:T(1,128)}', space=vmem, size = 0x12000, scoped, tag = 'internal scratch']
  %s0 = inlined_call_operand.vmem [shape: bf16[3,16,128], index: 0, kind: input, shape index: {}]
  %s1 = inlined_call_operand.vmem [shape: bf16[3,16,128], index: 1, kind: input, shape index: {}]
  %s2 = inlined_call_operand.vmem [shape: f32[16,16], index: 2, kind: input, shape index: {}]
  %s3 = inlined_call_operand.vmem [shape: f32[2,16], index: 3, kind: input, shape index: {}]
  %s4 = inlined_call_operand.vmem [shape: bf16[3,128,128], index: 4, kind: input, shape index: {}]
  %s5 = inlined_call_operand.vmem [shape: bf16[3,128,128], index: 5, kind: input, shape index: {}]
  %s6 = inlined_call_operand.vmem [shape: f32[3,2,128], index: 6, kind: input, shape index: {}]
  %s7 = inlined_call_operand.vmem [shape: bf16[3,128,128], index: 7, kind: input, shape index: {}]
  %s8 = inlined_call_operand.hbm [shape: bf16[3,128,128], index: 8, kind: input, shape index: {}]
  %s9 = inlined_call_operand.vmem [shape: f32[3,2,128], index: 9, kind: input, shape index: {}]
  %s10 = inlined_call_operand.vmem [shape: f32[3,16,128], index: 10, kind: output, shape index: {0}]
  %s11 = inlined_call_operand.vmem [shape: f32[3,2,128], index: 11, kind: output, shape index: {1}]
  %12 = xla_tuple %s10, %s11
  %s13 = sld [smem:[#allocation0]]
  $region85: #{_device_forward.1} parent=0
    _
  %s15 = ssub.s32 1, %s13
  %s16 = scalar_select 0, %s15, %s13
  $region1: #{_device_forward.1} parent=0
    #allocation2 [shape = 'u8[65536]{0}', space=vmem, size = 0x10000, scoped, tag = 'input window, operand 8']
    #allocation3 [shape = 's32[2]{0}', space=sflag, size = 0x8, scoped, tag = 'scoped memory for _device_forward.1']
    %17 = vsyncpa [#allocation3], 0
    %s18 = scalar_lea.sflag [#allocation3], 1
    %19 = vsyncpa %s18, 0
    loop: start=0, step=1, limit=5
    $region2: #{_device_forward.1} parent=1 // loop_pre_header
      _
    $region3: #{_device_forward.1} parent=1 // loop_header
      %s21 = sphi 0, %s25
      %p22 = scmp.ge.s32.totalorder %s21, 5
      %s31 = sphi 0, %s33
      %s34 = sphi 0, %s31
      %s35 = sphi 0, %s34
      %s51 = sphi 0, %s35
      %s57 = sphi 0, %s59
      %s60 = sphi 0, %s57
      %s61 = sphi 0, %s60
      %s77 = sphi 0, %s61
      %s81 = sphi 0, %s81
      %s83 = sphi 0, %s81
      %s84 = sphi 0, %s83
      %s98 = sphi 0, %s84
      %s102 = sphi 0, %s102
      %s104 = sphi 0, %s102
      %s105 = sphi 0, %s104
      %s119 = sphi 0, %s105
      %s125 = sphi 0, %s127
      %s128 = sphi 0, %s125
      %s129 = sphi 0, %s128
      %s145 = sphi 0, %s129
      %s151 = sphi 0, %s153
      %s154 = sphi 0, %s151
      %s155 = sphi 0, %s154
      %s171 = sphi 0, %s155
      %s177 = sphi 0, %s179
      %s180 = sphi 0, %s177
      %s181 = sphi 0, %s180
      %s197 = sphi 0, %s181
      %s203 = sphi 0, %s205
      %s206 = sphi 0, %s203
      %s207 = sphi 0, %s206
      %s223 = sphi 0, %s207
      %s229 = sphi 0, %s231
      %s232 = sphi 0, %s229
      %s233 = sphi 0, %s232
      %s249 = sphi 0, %s233
      %s255 = sphi 0, %s257
      %s258 = sphi 0, %s255
      %s259 = sphi 0, %s258
      %s275 = sphi 0, %s259
      %s281 = sphi 0, %s283
      %s284 = sphi 0, %s281
      %s285 = sphi 0, %s284
      %s301 = sphi 0, %s285
      %s307 = sphi 0, %s309
      %s310 = sphi 0, %s307
      %s311 = sphi 0, %s310
      %s327 = sphi 0, %s311
    $region4: #{_device_forward.1} parent=1 // loop_header_branch
      %24 = sbr.rel (%p22) target = $region8
    $region5: #{_device_forward.1} parent=1 // loop_body
      %s26 = ssub.s32 %s21, 1
      %s27 = ssub.s32 %s21, 2
      %s28 = sadd.s32 %s21, 1
      %s29 = ssub.s32 %s21, %s28
      %p30 = scmp.eq.s32.totalorder %s29, 0
      %s32 = sadd.s32 %s31, 1
      %s33 = scalar_select %p30, %s31, %s32
      %p36 = pneg %p30
      %p37 = scmp.eq.s32.totalorder %s21, 2
      %p38 = por %p36, %p37
      %p39 = scmp.ne.s32.totalorder %s31, %s34
      %p40 = scmp.eq.s32.totalorder %s21, 0
      %p41 = por %p39, %p40
      %p42 = scmp.ne.s32.totalorder %s31, %s34
      %p43 = scmp.eq.s32.totalorder %s26, 2
      %p44 = por %p42, %p43
      %p45 = scmp.ne.s32.totalorder %s34, %s35
      %p46 = scmp.eq.s32.totalorder %s26, 0
      %p47 = por %p45, %p46
      %p48 = scmp.ne.s32.totalorder %s34, %s35
      %p49 = scmp.eq.s32.totalorder %s27, 2
      %p50 = por %p48, %p49
      %p52 = scmp.ne.s32.totalorder %s35, %s51
      %p53 = scmp.eq.s32.totalorder %s27, 0
      %p54 = por %p52, %p53
      %s55 = ssub.s32 %s21, %s28
      %p56 = scmp.eq.s32.totalorder %s55, 0
      %s58 = sadd.s32 %s57, 1
      %s59 = scalar_select %p56, %s57, %s58
      %p62 = pneg %p56
      %p63 = scmp.eq.s32.totalorder %s21, 2
      %p64 = por %p62, %p63
      %p65 = scmp.ne.s32.totalorder %s57, %s60
      %p66 = scmp.eq.s32.totalorder %s21, 0
      %p67 = por %p65, %p66
      %p68 = scmp.ne.s32.totalorder %s57, %s60
      %p69 = scmp.eq.s32.totalorder %s26, 2
      %p70 = por %p68, %p69
      %p71 = scmp.ne.s32.totalorder %s60, %s61
      %p72 = scmp.eq.s32.totalorder %s26, 0
      %p73 = por %p71, %p72
      %p74 = scmp.ne.s32.totalorder %s60, %s61
      %p75 = scmp.eq.s32.totalorder %s27, 2
      %p76 = por %p74, %p75
      %p78 = scmp.ne.s32.totalorder %s61, %s77
      %p79 = scmp.eq.s32.totalorder %s27, 0
      %p80 = por %p78, %p79
      %s82 = sadd.s32 %s81, 1
      %p85 = scmp.eq.s32.totalorder %s21, 2
      %p86 = scmp.ne.s32.totalorder %s81, %s83
      %p87 = scmp.eq.s32.totalorder %s21, 0
      %p88 = por %p86, %p87
      %p89 = scmp.ne.s32.totalorder %s81, %s83
      %p90 = scmp.eq.s32.totalorder %s26, 2
      %p91 = por %p89, %p90
      %p92 = scmp.ne.s32.totalorder %s83, %s84
      %p93 = scmp.eq.s32.totalorder %s26, 0
      %p94 = por %p92, %p93
      %p95 = scmp.ne.s32.totalorder %s83, %s84
      %p96 = scmp.eq.s32.totalorder %s27, 2
      %p97 = por %p95, %p96
      %p99 = scmp.ne.s32.totalorder %s84, %s98
      %p100 = scmp.eq.s32.totalorder %s27, 0
      %p101 = por %p99, %p100
      %s103 = sadd.s32 %s102, 1
      %p106 = scmp.eq.s32.totalorder %s21, 2
      %p107 = scmp.ne.s32.totalorder %s102, %s104
      %p108 = scmp.eq.s32.totalorder %s21, 0
      %p109 = por %p107, %p108
      %p110 = scmp.ne.s32.totalorder %s102, %s104
      %p111 = scmp.eq.s32.totalorder %s26, 2
      %p112 = por %p110, %p111
      %p113 = scmp.ne.s32.totalorder %s104, %s105
      %p114 = scmp.eq.s32.totalorder %s26, 0
      %p115 = por %p113, %p114
      %p116 = scmp.ne.s32.totalorder %s104, %s105
      %p117 = scmp.eq.s32.totalorder %s27, 2
      %p118 = por %p116, %p117
      %p120 = scmp.ne.s32.totalorder %s105, %s119
      %p121 = scmp.eq.s32.totalorder %s27, 0
      %p122 = por %p120, %p121
      %s123 = ssub.s32 %s21, %s28
      %p124 = scmp.eq.s32.totalorder %s123, 0
      %s126 = sadd.s32 %s125, 1
      %s127 = scalar_select %p124, %s125, %s126
      %p130 = pneg %p124
      %p131 = scmp.eq.s32.totalorder %s21, 2
      %p132 = por %p130, %p131
      %p133 = scmp.ne.s32.totalorder %s125, %s128
      %p134 = scmp.eq.s32.totalorder %s21, 0
      %p135 = por %p133, %p134
      %p136 = scmp.ne.s32.totalorder %s125, %s128
      %p137 = scmp.eq.s32.totalorder %s26, 2
      %p138 = por %p136, %p137
      %p139 = scmp.ne.s32.totalorder %s128, %s129
      %p140 = scmp.eq.s32.totalorder %s26, 0
      %p141 = por %p139, %p140
      %p142 = scmp.ne.s32.totalorder %s128, %s129
      %p143 = scmp.eq.s32.totalorder %s27, 2
      %p144 = por %p142, %p143
      %p146 = scmp.ne.s32.totalorder %s129, %s145
      %p147 = scmp.eq.s32.totalorder %s27, 0
      %p148 = por %p146, %p147
      %s149 = ssub.s32 %s21, %s28
      %p150 = scmp.eq.s32.totalorder %s149, 0
      %s152 = sadd.s32 %s151, 1
      %s153 = scalar_select %p150, %s151, %s152
      %p156 = pneg %p150
      %p157 = scmp.eq.s32.totalorder %s21, 2
      %p158 = por %p156, %p157
      %p159 = scmp.ne.s32.totalorder %s151, %s154
      %p160 = scmp.eq.s32.totalorder %s21, 0
      %p161 = por %p159, %p160
      %p162 = scmp.ne.s32.totalorder %s151, %s154
      %p163 = scmp.eq.s32.totalorder %s26, 2
      %p164 = por %p162, %p163
      %p165 = scmp.ne.s32.totalorder %s154, %s155
      %p166 = scmp.eq.s32.totalorder %s26, 0
      %p167 = por %p165, %p166
      %p168 = scmp.ne.s32.totalorder %s154, %s155
      %p169 = scmp.eq.s32.totalorder %s27, 2
      %p170 = por %p168, %p169
      %p172 = scmp.ne.s32.totalorder %s155, %s171
      %p173 = scmp.eq.s32.totalorder %s27, 0
      %p174 = por %p172, %p173
      %s175 = ssub.s32 %s21, %s28
      %p176 = scmp.eq.s32.totalorder %s175, 0
      %s178 = sadd.s32 %s177, 1
      %s179 = scalar_select %p176, %s177, %s178
      %p182 = pneg %p176
      %p183 = scmp.eq.s32.totalorder %s21, 2
      %p184 = por %p182, %p183
      %p185 = scmp.ne.s32.totalorder %s177, %s180
      %p186 = scmp.eq.s32.totalorder %s21, 0
      %p187 = por %p185, %p186
      %p188 = scmp.ne.s32.totalorder %s177, %s180
      %p189 = scmp.eq.s32.totalorder %s26, 2
      %p190 = por %p188, %p189
      %p191 = scmp.ne.s32.totalorder %s180, %s181
      %p192 = scmp.eq.s32.totalorder %s26, 0
      %p193 = por %p191, %p192
      %p194 = scmp.ne.s32.totalorder %s180, %s181
      %p195 = scmp.eq.s32.totalorder %s27, 2
      %p196 = por %p194, %p195
      %p198 = scmp.ne.s32.totalorder %s181, %s197
      %p199 = scmp.eq.s32.totalorder %s27, 0
      %p200 = por %p198, %p199
      %s201 = ssub.s32 %s21, %s28
      %p202 = scmp.eq.s32.totalorder %s201, 0
      %s204 = sadd.s32 %s203, 1
      %s205 = scalar_select %p202, %s203, %s204
      %p208 = pneg %p202
      %p209 = scmp.eq.s32.totalorder %s21, 2
      %p210 = por %p208, %p209
      %p211 = scmp.ne.s32.totalorder %s203, %s206
      %p212 = scmp.eq.s32.totalorder %s21, 0
      %p213 = por %p211, %p212
      %p214 = scmp.ne.s32.totalorder %s203, %s206
      %p215 = scmp.eq.s32.totalorder %s26, 2
      %p216 = por %p214, %p215
      %p217 = scmp.ne.s32.totalorder %s206, %s207
      %p218 = scmp.eq.s32.totalorder %s26, 0
      %p219 = por %p217, %p218
      %p220 = scmp.ne.s32.totalorder %s206, %s207
      %p221 = scmp.eq.s32.totalorder %s27, 2
      %p222 = por %p220, %p221
      %p224 = scmp.ne.s32.totalorder %s207, %s223
      %p225 = scmp.eq.s32.totalorder %s27, 0
      %p226 = por %p224, %p225
      %s227 = ssub.s32 %s21, %s28
      %p228 = scmp.eq.s32.totalorder %s227, 0
      %s230 = sadd.s32 %s229, 1
      %s231 = scalar_select %p228, %s229, %s230
      %p234 = pneg %p228
      %p235 = scmp.eq.s32.totalorder %s21, 2
      %p236 = por %p234, %p235
      %p237 = scmp.ne.s32.totalorder %s229, %s232
      %p238 = scmp.eq.s32.totalorder %s21, 0
      %p239 = por %p237, %p238
      %p240 = scmp.ne.s32.totalorder %s229, %s232
      %p241 = scmp.eq.s32.totalorder %s26, 2
      %p242 = por %p240, %p241
      %p243 = scmp.ne.s32.totalorder %s232, %s233
      %p244 = scmp.eq.s32.totalorder %s26, 0
      %p245 = por %p243, %p244
      %p246 = scmp.ne.s32.totalorder %s232, %s233
      %p247 = scmp.eq.s32.totalorder %s27, 2
      %p248 = por %p246, %p247
      %p250 = scmp.ne.s32.totalorder %s233, %s249
      %p251 = scmp.eq.s32.totalorder %s27, 0
      %p252 = por %p250, %p251
      %s253 = ssub.s32 %s21, %s28
      %p254 = scmp.eq.s32.totalorder %s253, 0
      %s256 = sadd.s32 %s255, 1
      %s257 = scalar_select %p254, %s255, %s256
      %p260 = pneg %p254
      %p261 = scmp.eq.s32.totalorder %s21, 2
      %p262 = por %p260, %p261
      %p263 = scmp.ne.s32.totalorder %s255, %s258
      %p264 = scmp.eq.s32.totalorder %s21, 0
      %p265 = por %p263, %p264
      %p266 = scmp.ne.s32.totalorder %s255, %s258
      %p267 = scmp.eq.s32.totalorder %s26, 2
      %p268 = por %p266, %p267
      %p269 = scmp.ne.s32.totalorder %s258, %s259
      %p270 = scmp.eq.s32.totalorder %s26, 0
      %p271 = por %p269, %p270
      %p272 = scmp.ne.s32.totalorder %s258, %s259
      %p273 = scmp.eq.s32.totalorder %s27, 2
      %p274 = por %p272, %p273
      %p276 = scmp.ne.s32.totalorder %s259, %s275
      %p277 = scmp.eq.s32.totalorder %s27, 0
      %p278 = por %p276, %p277
      %s279 = ssub.s32 %s21, %s28
      %p280 = scmp.eq.s32.totalorder %s279, 0
      %s282 = sadd.s32 %s281, 1
      %s283 = scalar_select %p280, %s281, %s282
      %p286 = pneg %p280
      %p287 = scmp.eq.s32.totalorder %s21, 2
      %p288 = por %p286, %p287
      %p289 = scmp.ne.s32.totalorder %s281, %s284
      %p290 = scmp.eq.s32.totalorder %s21, 0
      %p291 = por %p289, %p290
      %p292 = scmp.ne.s32.totalorder %s281, %s284
      %p293 = scmp.eq.s32.totalorder %s26, 2
      %p294 = por %p292, %p293
      %p295 = scmp.ne.s32.totalorder %s284, %s285
      %p296 = scmp.eq.s32.totalorder %s26, 0
      %p297 = por %p295, %p296
      %p298 = scmp.ne.s32.totalorder %s284, %s285
      %p299 = scmp.eq.s32.totalorder %s27, 2
      %p300 = por %p298, %p299
      %p302 = scmp.ne.s32.totalorder %s285, %s301
      %p303 = scmp.eq.s32.totalorder %s27, 0
      %p304 = por %p302, %p303
      %s305 = ssub.s32 %s21, %s28
      %p306 = scmp.eq.s32.totalorder %s305, 0
      %s308 = sadd.s32 %s307, 1
      %s309 = scalar_select %p306, %s307, %s308
      %p312 = pneg %p306
      %p313 = scmp.eq.s32.totalorder %s21, 2
      %p314 = por %p312, %p313
      %p315 = scmp.ne.s32.totalorder %s307, %s310
      %p316 = scmp.eq.s32.totalorder %s21, 0
      %p317 = por %p315, %p316
      %p318 = scmp.ne.s32.totalorder %s307, %s310
      %p319 = scmp.eq.s32.totalorder %s26, 2
      %p320 = por %p318, %p319
      %p321 = scmp.ne.s32.totalorder %s310, %s311
      %p322 = scmp.eq.s32.totalorder %s26, 0
      %p323 = por %p321, %p322
      %p324 = scmp.ne.s32.totalorder %s310, %s311
      %p325 = scmp.eq.s32.totalorder %s27, 2
      %p326 = por %p324, %p325
      %p328 = scmp.ne.s32.totalorder %s311, %s327
      %p329 = scmp.eq.s32.totalorder %s27, 0
      %p330 = por %p328, %p329
      %p331 = scmp.le.s32.totalorder 1, %s21
      %p332 = scmp.lt.s32.totalorder %s21, 4
      %p333 = pnand %p331, %p332
      %p334 = pneg %p333
      // Predicated region
      $region9: #{_device_forward.1} parent=5 // pred_check
        _
      $region10: #{_device_forward.1} parent=5 // pred_check_branch
        %336 = sbr.rel (%p333) target = $region12
      $region11: #{_device_forward.1} parent=5 // pred_region
        %s337 = ssub.s32 %s21, 1
        // Predicated region
        $region13: #{_device_forward.1} parent=11 // pred_check
          %p338 = pneg %p94
        $region14: #{_device_forward.1} parent=11 // pred_check_branch
          %340 = sbr.rel (%p338) target = $region16
        $region15: #{_device_forward.1} parent=11 // pred_region
          _
        $region16: #{_device_forward.1} parent=11 // pred_fallthru
          _
        // Predicated region
        $region17: #{_device_forward.1} parent=11 // pred_check
          %p341 = pneg %p115
        $region18: #{_device_forward.1} parent=11 // pred_check_branch
          %343 = sbr.rel (%p341) target = $region20
        $region19: #{_device_forward.1} parent=11 // pred_region
          _
        $region20: #{_device_forward.1} parent=11 // pred_fallthru
          _
      $region12: #{_device_forward.1} parent=5 // pred_fallthru
        _
      %p344 = scmp.lt.s32.totalorder %s21, 3
      // Predicated region
      $region21: #{_device_forward.1} parent=5 // pred_check
        %p345 = pneg %p344
      $region22: #{_device_forward.1} parent=5 // pred_check_branch
        %347 = sbr.rel (%p345) target = $region24
      $region23: #{_device_forward.1} parent=5 // pred_region
        // Predicated region
        $region25: #{_device_forward.1} parent=23 // pred_check
          %p348 = pneg %p41
        $region26: #{_device_forward.1} parent=23 // pred_check_branch
          %350 = sbr.rel (%p348) target = $region28
        $region27: #{_device_forward.1} parent=23 // pred_region
          %p351 = scmp.lt.s32.totalorder %s21, 2
          %s352 = scalar_select %p351, %s21, 2
          %s353 = smul.addr %s352, 2
          %s354 = smul.addr %s353, 4
          %s355 = scalar_lea.vmem %s0, %s354
        $region28: #{_device_forward.1} parent=23 // pred_fallthru
          _
        // Predicated region
        $region29: #{_device_forward.1} parent=23 // pred_check
          %p356 = pneg %p67
        $region30: #{_device_forward.1} parent=23 // pred_check_branch
          %358 = sbr.rel (%p356) target = $region32
        $region31: #{_device_forward.1} parent=23 // pred_region
          %p359 = scmp.lt.s32.totalorder %s21, 2
          %s360 = scalar_select %p359, %s21, 2
          %s361 = smul.addr %s360, 2
          %s362 = smul.addr %s361, 4
          %s363 = scalar_lea.vmem %s1, %s362
        $region32: #{_device_forward.1} parent=23 // pred_fallthru
          _
        // Predicated region
        $region33: #{_device_forward.1} parent=23 // pred_check
          %p364 = pneg %p135
        $region34: #{_device_forward.1} parent=23 // pred_check_branch
          %366 = sbr.rel (%p364) target = $region36
        $region35: #{_device_forward.1} parent=23 // pred_region
          %p367 = scmp.lt.s32.totalorder %s21, 2
          %s368 = scalar_select %p367, %s21, 2
          %s369 = smul.addr %s368, 16
          %s370 = smul.addr %s369, 4
          %s371 = scalar_lea.vmem %s4, %s370
        $region36: #{_device_forward.1} parent=23 // pred_fallthru
          _
        // Predicated region
        $region37: #{_device_forward.1} parent=23 // pred_check
          %p372 = pneg %p161
        $region38: #{_device_forward.1} parent=23 // pred_check_branch
          %374 = sbr.rel (%p372) target = $region40
        $region39: #{_device_forward.1} parent=23 // pred_region
          %p375 = scmp.lt.s32.totalorder %s21, 2
          %s376 = scalar_select %p375, %s21, 2
          %s377 = smul.addr %s376, 16
          %s378 = smul.addr %s377, 4
          %s379 = scalar_lea.vmem %s5, %s378
        $region40: #{_device_forward.1} parent=23 // pred_fallthru
          _
        // Predicated region
        $region41: #{_device_forward.1} parent=23 // pred_check
          %p380 = pneg %p187
        $region42: #{_device_forward.1} parent=23 // pred_check_branch
          %382 = sbr.rel (%p380) target = $region44
        $region43: #{_device_forward.1} parent=23 // pred_region
          %p383 = scmp.lt.s32.totalorder %s21, 2
          %s384 = scalar_select %p383, %s21, 2
          %s385 = smul.addr %s384, 2
          %s386 = scalar_lea.vmem %s6, %s385
        $region44: #{_device_forward.1} parent=23 // pred_fallthru
          _
        // Predicated region
        $region45: #{_device_forward.1} parent=23 // pred_check
          %p387 = pneg %p213
        $region46: #{_device_forward.1} parent=23 // pred_check_branch
          %389 = sbr.rel (%p387) target = $region48
        $region47: #{_device_forward.1} parent=23 // pred_region
          %p390 = scmp.lt.s32.totalorder %s21, 2
          %s391 = scalar_select %p390, %s21, 2
          %s392 = smul.addr %s391, 16
          %s393 = smul.addr %s392, 4
          %s394 = scalar_lea.vmem %s7, %s393
        $region48: #{_device_forward.1} parent=23 // pred_fallthru
          _
        // Predicated region
        $region49: #{_device_forward.1} parent=23 // pred_check
          %p395 = pneg %p239
        $region50: #{_device_forward.1} parent=23 // pred_check_branch
          %397 = sbr.rel (%p395) target = $region52
        $region51: #{_device_forward.1} parent=23 // pred_region
          %s398 = sand.u32 %s229, 1
          %s399 = scalar_lea.sflag [#allocation3], %s398
          %s400 = sand.u32 %s229, 1
          %s401 = smul.addr %s400, 64
          %s402 = scalar_lea.vmem [#allocation2], %s401
          %s404 = ssub.s32 1024, 1024
          %405 = vsyncadd %s399, %s404
          %s406 = smul.addr %s21, 16
          %s407 = smul.addr %s406, 64
          %s408 = scalar_lea.hbm %s8, %s407
          %s409 = sshll.u32 %s402, 4
          %s410 = int_to_ptr.vmem [resolvable:$true] %s409
          %415 = dma.hbm_to_vmem [thread:$0]  %s408, 1024, %s410, %s399, 64, 64, 4
        $region52: #{_device_forward.1} parent=23 // pred_fallthru
          _
        // Predicated region
        $region53: #{_device_forward.1} parent=23 // pred_check
          %p416 = pneg %p265
        $region54: #{_device_forward.1} parent=23 // pred_check_branch
          %418 = sbr.rel (%p416) target = $region56
        $region55: #{_device_forward.1} parent=23 // pred_region
          %p419 = scmp.lt.s32.totalorder %s21, 2
          %s420 = scalar_select %p419, %s21, 2
          %s421 = smul.addr %s420, 2
          %s422 = scalar_lea.vmem %s9, %s421
        $region56: #{_device_forward.1} parent=23 // pred_fallthru
          _
      $region24: #{_device_forward.1} parent=5 // pred_fallthru
        _
      %p423 = scmp.le.s32.totalorder 1, %s21
      %p424 = scmp.lt.s32.totalorder %s21, 4
      %p425 = pnand %p423, %p424
      %p426 = pneg %p425
      // Predicated region
      $region57: #{_device_forward.1} parent=5 // pred_check
        _
      $region58: #{_device_forward.1} parent=5 // pred_check_branch
        %428 = sbr.rel (%p425) target = $region60
      $region59: #{_device_forward.1} parent=5 // pred_region
        %s429 = ssub.s32 %s21, 1
        %s430 = sand.u32 %s232, 1
        %s431 = scalar_lea.sflag [#allocation3], %s430
        %s432 = sand.u32 %s232, 1
        %s433 = smul.addr %s432, 64
        %s434 = scalar_lea.vmem [#allocation2], %s433
        // Predicated region
        $region61: #{_device_forward.1} parent=59 // pred_check
          %p435 = pneg %p245
        $region62: #{_device_forward.1} parent=59 // pred_check_branch
          %437 = sbr.rel (%p435) target = $region64
        $region63: #{_device_forward.1} parent=59 // pred_region
          %438 = dma.done %s431, 1024
        $region64: #{_device_forward.1} parent=59 // pred_fallthru
          _
        %p439 = scmp.lt.s32.totalorder %s26, 2
        %s440 = scalar_select %p439, %s26, 2
        %s441 = smul.addr %s440, 2
        %s442 = smul.addr %s441, 4
        %s443 = scalar_lea.vmem %s0, %s442
        %p444 = pneg %p47
        %p445 = pneg %p44
        %p446 = scmp.lt.s32.totalorder %s26, 2
        %s447 = scalar_select %p446, %s26, 2
        %s448 = smul.addr %s447, 2
        %s449 = smul.addr %s448, 4
        %s450 = scalar_lea.vmem %s1, %s449
        %p451 = pneg %p73
        %p452 = pneg %p70
        %p453 = pneg %p94
        %p454 = pneg %p91
        %p455 = pneg %p115
        %p456 = pneg %p112
        %p457 = scmp.lt.s32.totalorder %s26, 2
        %s458 = scalar_select %p457, %s26, 2
        %s459 = smul.addr %s458, 16
        %s460 = smul.addr %s459, 4
        %s461 = scalar_lea.vmem %s4, %s460
        %p462 = pneg %p141
        %p463 = pneg %p138
        %p464 = scmp.lt.s32.totalorder %s26, 2
        %s465 = scalar_select %p464, %s26, 2
        %s466 = smul.addr %s465, 16
        %s467 = smul.addr %s466, 4
        %s468 = scalar_lea.vmem %s5, %s467
        %p469 = pneg %p167
        %p470 = pneg %p164
        %p471 = scmp.lt.s32.totalorder %s26, 2
        %s472 = scalar_select %p471, %s26, 2
        %s473 = smul.addr %s472, 2
        %s474 = scalar_lea.vmem %s6, %s473
        %p475 = pneg %p193
        %p476 = pneg %p190
        %p477 = scmp.lt.s32.totalorder %s26, 2
        %s478 = scalar_select %p477, %s26, 2
        %s479 = smul.addr %s478, 16
        %s480 = smul.addr %s479, 4
        %s481 = scalar_lea.vmem %s7, %s480
        %p482 = pneg %p219
        %p483 = pneg %p216
        %s484 = sand.u32 %s232, 1
        %s485 = scalar_lea.sflag [#allocation3], %s484
        %s486 = sand.u32 %s232, 1
        %s487 = smul.addr %s486, 64
        %s488 = scalar_lea.vmem [#allocation2], %s487
        %p489 = pneg %p245
        %p490 = pneg %p242
        %p491 = scmp.lt.s32.totalorder %s26, 2
        %s492 = scalar_select %p491, %s26, 2
        %s493 = smul.addr %s492, 2
        %s494 = scalar_lea.vmem %s9, %s493
        %p495 = pneg %p271
        %p496 = pneg %p268
        %p497 = pneg %p297
        %p498 = pneg %p294
        %p499 = scmp.lt.s32.totalorder %s26, 2
        %s500 = scalar_select %p499, %s26, 2
        %s501 = smul.addr %s500, 2
        %s502 = smul.addr %s501, 8
        %s503 = scalar_lea.vmem %s10, %s502
        %p504 = pneg %p323
        %p505 = pneg %p320
        %p506 = scmp.lt.s32.totalorder %s26, 2
        %s507 = scalar_select %p506, %s26, 2
        %s508 = smul.addr %s507, 2
        %s509 = scalar_lea.vmem %s11, %s508
        %p510 = scmp.lt.s32.totalorder %s26, 2
        %s511 = scalar_select %p510, %s26, 2
        %s512 = smul.addr %s511, 2
        %s513 = smul.addr %s512, 4
        %s514 = scalar_lea.vmem %s0, %s513
        %p515 = scmp.lt.s32.totalorder %s26, 2
        %s516 = scalar_select %p515, %s26, 2
        %s517 = smul.addr %s516, 2
        %s518 = smul.addr %s517, 4
        %s519 = scalar_lea.vmem %s1, %s518
        %p520 = scmp.lt.s32.totalorder %s26, 2
        %s521 = scalar_select %p520, %s26, 2
        %s522 = smul.addr %s521, 16
        %s523 = smul.addr %s522, 4
        %s524 = scalar_lea.vmem %s4, %s523
        %p525 = scmp.lt.s32.totalorder %s26, 2
        %s526 = scalar_select %p525, %s26, 2
        %s527 = smul.addr %s526, 16
        %s528 = smul.addr %s527, 4
        %s529 = scalar_lea.vmem %s5, %s528
        %p530 = scmp.lt.s32.totalorder %s26, 2
        %s531 = scalar_select %p530, %s26, 2
        %s532 = smul.addr %s531, 2
        %s533 = scalar_lea.vmem %s6, %s532
        %p534 = scmp.lt.s32.totalorder %s26, 2
        %s535 = scalar_select %p534, %s26, 2
        %s536 = smul.addr %s535, 16
        %s537 = smul.addr %s536, 4
        %s538 = scalar_lea.vmem %s7, %s537
        %p539 = scmp.lt.s32.totalorder %s26, 2
        %s540 = scalar_select %p539, %s26, 2
        %s541 = smul.addr %s540, 2
        %s542 = scalar_lea.vmem %s9, %s541
        %p543 = scmp.lt.s32.totalorder %s26, 2
        %s544 = scalar_select %p543, %s26, 2
        %s545 = smul.addr %s544, 2
        %s546 = smul.addr %s545, 8
        %s547 = scalar_lea.vmem %s10, %s546
        %p548 = scmp.lt.s32.totalorder %s26, 2
        %s549 = scalar_select %p548, %s26, 2
        %s550 = smul.addr %s549, 2
        %s551 = scalar_lea.vmem %s11, %s550
        %v553 = vld [vmem:[%s514] sm:$0xf]
        %v554 = vld [vmem:[%s514 + $0x4] sm:$0xf]
        %v555 = vld [vmem:[%s519] sm:$0xf]
        %v556 = vld [vmem:[%s519 + $0x4] sm:$0xf]
        %v557 = vld [vmem:[%s533] sm:$0x3]
        %v558 = vld [vmem:[%s542] sm:$0x3]
        %v559 = vld [vmem:[%s524] sm:$0xf]
        %v560 = vld [vmem:[%s524 + $0x4] sm:$0xf]
        %v561 = vld [vmem:[%s524 + $0x8] sm:$0xf]
        %v562 = vld [vmem:[%s524 + $0xc] sm:$0xf]
        %v563 = vld [vmem:[%s524 + $0x10] sm:$0xf]
        %v564 = vld [vmem:[%s524 + $0x14] sm:$0xf]
        %v565 = vld [vmem:[%s524 + $0x18] sm:$0xf]
        %v566 = vld [vmem:[%s524 + $0x1c] sm:$0xf]
        %v567 = vld [vmem:[%s524 + $0x20] sm:$0xf]
        %v568 = vld [vmem:[%s524 + $0x24] sm:$0xf]
        %v569 = vld [vmem:[%s524 + $0x28] sm:$0xf]
        %v570 = vld [vmem:[%s524 + $0x2c] sm:$0xf]
        %v571 = vld [vmem:[%s524 + $0x30] sm:$0xf]
        %v572 = vld [vmem:[%s524 + $0x34] sm:$0xf]
        %v573 = vld [vmem:[%s524 + $0x38] sm:$0xf]
        %v574 = vld [vmem:[%s524 + $0x3c] sm:$0xf]
        %v575 = vlaneseq
        %v576 = vshrl.u32 %v575, 7
        %v577 = vsub.s32 0, %v576
        %v578 = vrot.slane %v557, %v577
        %v581 = vunpack.c.l.b16 %v553
        %v582 = vunpack.c.l.b16 %v554
        %v583 = vpack.c.b16 %v582, %v581
        %v601 = vunpack.c.l.b16 %v559
        %v602 = vunpack.c.l.b16 %v560
        %v603 = vunpack.c.l.b16 %v561
        %v604 = vunpack.c.l.b16 %v562
        %v605 = vunpack.c.l.b16 %v563
        %v606 = vunpack.c.l.b16 %v564
        %v607 = vunpack.c.l.b16 %v565
        %v608 = vunpack.c.l.b16 %v566
        %v609 = vunpack.c.l.b16 %v567
        %v610 = vunpack.c.l.b16 %v568
        %v611 = vunpack.c.l.b16 %v569
        %v612 = vunpack.c.l.b16 %v570
        %v613 = vunpack.c.l.b16 %v571
        %v614 = vunpack.c.l.b16 %v572
        %v615 = vunpack.c.l.b16 %v573
        %v616 = vunpack.c.l.b16 %v574
        %v617 = vpack.c.b16 %v602, %v601
        %v618 = vpack.c.b16 %v604, %v603
        %v619 = vpack.c.b16 %v606, %v605
        %v620 = vpack.c.b16 %v608, %v607
        %v621 = vpack.c.b16 %v610, %v609
        %v622 = vpack.c.b16 %v612, %v611
        %v623 = vpack.c.b16 %v614, %v613
        %v624 = vpack.c.b16 %v616, %v615
        %633 = vmatprep.subr.bf16.mxu0 0
        %634 = vmatpush1.bf16.msra.mxu0 %v617
        %635 = vmatprep.subr.bf16.mxu0 0
        %636 = vmatpush1.bf16.msra.mxu0 %v618
        %637 = vmatprep.subr.bf16.mxu0 0
        %638 = vmatpush1.bf16.msra.mxu0 %v619
        %639 = vmatprep.subr.bf16.mxu0 0
        %640 = vmatpush1.bf16.msra.mxu0 %v620
        %641 = vmatprep.subr.bf16.mxu0 0
        %642 = vmatpush1.bf16.msra.mxu0 %v621
        %643 = vmatprep.subr.bf16.mxu0 0
        %644 = vmatpush1.bf16.msra.mxu0 %v622
        %645 = vmatprep.subr.bf16.mxu0 0
        %646 = vmatpush1.bf16.msra.mxu0 %v623
        %647 = vmatprep.subr.bf16.mxu0 0
        %648 = vmatpush1.bf16.msra.mxu0 %v624
        %649 = vmatprep.subr.bf16.mxu0 0
        %650 = vmatpush1.bf16.msra.mxu0 0
        %651 = vmatprep.subr.bf16.mxu0 0
        %652 = vmatpush1.bf16.msra.mxu0 0
        %653 = vmatprep.subr.bf16.mxu0 0
        %654 = vmatpush1.bf16.msra.mxu0 0
        %655 = vmatprep.subr.bf16.mxu0 0
        %656 = vmatpush1.bf16.msra.mxu0 0
        %657 = vmatprep.subr.bf16.mxu0 0
        %658 = vmatpush1.bf16.msra.mxu0 0
        %659 = vmatprep.subr.bf16.mxu0 0
        %660 = vmatpush1.bf16.msra.mxu0 0
        %661 = vmatprep.subr.bf16.mxu0 0
        %662 = vmatpush1.bf16.msra.mxu0 0
        %663 = vmatprep.subr.bf16.mxu0 0
        %664 = vmatpush1.bf16.msra.mxu0 0
        %665 = vmatprep.mubr.bf16.mxu0 0
        %666 = vmatmul.mubr.bf16.gmra.mrb[0].mxu0 %v583
        %v667 = vpop.f32.mrb[0].mxu0
        %v668 = vadd.f32 %v578, %v667
        %v669 = vpop.f32.mrb[0].mxu0
        %v670 = vpop.f32.mrb[0].mxu0
        %v671 = vadd.f32 %v578, %v670
        %v672 = vpop.f32.mrb[0].mxu0
        %673 = vdwg.mxu0
        %v674 = vmax.f32 %v668, 0.0
        %v675 = vmax.f32 %v671, 0.0
        %v676 = vld [vmem:[%s529] sm:$0xf]
        %v677 = vld [vmem:[%s529 + $0x4] sm:$0xf]
        %v678 = vld [vmem:[%s529 + $0x8] sm:$0xf]
        %v679 = vld [vmem:[%s529 + $0xc] sm:$0xf]
        %v680 = vld [vmem:[%s529 + $0x10] sm:$0xf]
        %v681 = vld [vmem:[%s529 + $0x14] sm:$0xf]
        %v682 = vld [vmem:[%s529 + $0x18] sm:$0xf]
        %v683 = vld [vmem:[%s529 + $0x1c] sm:$0xf]
        %v684 = vld [vmem:[%s529 + $0x20] sm:$0xf]
        %v685 = vld [vmem:[%s529 + $0x24] sm:$0xf]
        %v686 = vld [vmem:[%s529 + $0x28] sm:$0xf]
        %v687 = vld [vmem:[%s529 + $0x2c] sm:$0xf]
        %v688 = vld [vmem:[%s529 + $0x30] sm:$0xf]
        %v689 = vld [vmem:[%s529 + $0x34] sm:$0xf]
        %v690 = vld [vmem:[%s529 + $0x38] sm:$0xf]
        %v691 = vld [vmem:[%s529 + $0x3c] sm:$0xf]
        %v692 = vlaneseq
        %v693 = vshrl.u32 %v692, 7
        %v694 = vsub.s32 1, %v693
        %v695 = vrot.slane %v557, %v694
        %v698 = vunpack.c.l.b16 %v555
        %v699 = vunpack.c.l.b16 %v556
        %v700 = vpack.c.b16 %v699, %v698
        %v718 = vunpack.c.l.b16 %v676
        %v719 = vunpack.c.l.b16 %v677
        %v720 = vunpack.c.l.b16 %v678
        %v721 = vunpack.c.l.b16 %v679
        %v722 = vunpack.c.l.b16 %v680
        %v723 = vunpack.c.l.b16 %v681
        %v724 = vunpack.c.l.b16 %v682
        %v725 = vunpack.c.l.b16 %v683
        %v726 = vunpack.c.l.b16 %v684
        %v727 = vunpack.c.l.b16 %v685
        %v728 = vunpack.c.l.b16 %v686
        %v729 = vunpack.c.l.b16 %v687
        %v730 = vunpack.c.l.b16 %v688
        %v731 = vunpack.c.l.b16 %v689
        %v732 = vunpack.c.l.b16 %v690
        %v733 = vunpack.c.l.b16 %v691
        %v734 = vpack.c.b16 %v719, %v718
        %v735 = vpack.c.b16 %v721, %v720
        %v736 = vpack.c.b16 %v723, %v722
        %v737 = vpack.c.b16 %v725, %v724
        %v738 = vpack.c.b16 %v727, %v726
        %v739 = vpack.c.b16 %v729, %v728
        %v740 = vpack.c.b16 %v731, %v730
        %v741 = vpack.c.b16 %v733, %v732
        %750 = vmatprep.subr.bf16.mxu0 0
        %751 = vmatpush1.bf16.msra.mxu0 %v734
        %752 = vmatprep.subr.bf16.mxu0 0
        %753 = vmatpush1.bf16.msra.mxu0 %v735
        %754 = vmatprep.subr.bf16.mxu0 0
        %755 = vmatpush1.bf16.msra.mxu0 %v736
        %756 = vmatprep.subr.bf16.mxu0 0
        %757 = vmatpush1.bf16.msra.mxu0 %v737
        %758 = vmatprep.subr.bf16.mxu0 0
        %759 = vmatpush1.bf16.msra.mxu0 %v738
        %760 = vmatprep.subr.bf16.mxu0 0
        %761 = vmatpush1.bf16.msra.mxu0 %v739
        %762 = vmatprep.subr.bf16.mxu0 0
        %763 = vmatpush1.bf16.msra.mxu0 %v740
        %764 = vmatprep.subr.bf16.mxu0 0
        %765 = vmatpush1.bf16.msra.mxu0 %v741
        %766 = vmatprep.subr.bf16.mxu0 0
        %767 = vmatpush1.bf16.msra.mxu0 0
        %768 = vmatprep.subr.bf16.mxu0 0
        %769 = vmatpush1.bf16.msra.mxu0 0
        %770 = vmatprep.subr.bf16.mxu0 0
        %771 = vmatpush1.bf16.msra.mxu0 0
        %772 = vmatprep.subr.bf16.mxu0 0
        %773 = vmatpush1.bf16.msra.mxu0 0
        %774 = vmatprep.subr.bf16.mxu0 0
        %775 = vmatpush1.bf16.msra.mxu0 0
        %776 = vmatprep.subr.bf16.mxu0 0
        %777 = vmatpush1.bf16.msra.mxu0 0
        %778 = vmatprep.subr.bf16.mxu0 0
        %779 = vmatpush1.bf16.msra.mxu0 0
        %780 = vmatprep.subr.bf16.mxu0 0
        %781 = vmatpush1.bf16.msra.mxu0 0
        %782 = vmatprep.mubr.bf16.mxu0 0
        %783 = vmatmul.mubr.bf16.gmra.mrb[0].mxu0 %v700
        %v784 = vpop.f32.mrb[0].mxu0
        %v785 = vadd.f32 %v695, %v784
        %v786 = vpop.f32.mrb[0].mxu0
        %v787 = vpop.f32.mrb[0].mxu0
        %v788 = vadd.f32 %v695, %v787
        %v789 = vpop.f32.mrb[0].mxu0
        %790 = vdwg.mxu0
        %v791 = vmax.f32 %v785, 0.0
        %v792 = vmax.f32 %v788, 0.0
        %v793 = vpack.c.bf16 %v675, %v674
        %v794 = vpack.c.bf16 %v792, %v791
        %795 = vmatprep.subr.bf16.mxu0 0
        %796 = vmatpush1.bf16.xpose.msra.mxu0 %v793
        %797 = vmatprep.subr.bf16.mxu0 0
        %798 = vmatpush1.bf16.xpose.msra.mxu0 0
        %799 = vmatprep.subr.bf16.mxu0 0
        %800 = vmatpush1.bf16.xpose.msra.mxu0 0
        %801 = vmatprep.subr.bf16.mxu0 0
        %802 = vmatpush1.bf16.xpose.msra.mxu0 0
        %803 = vmatprep.subr.bf16.mxu0 0
        %804 = vmatpush1.bf16.xpose.msra.mxu0 0
        %805 = vmatprep.subr.bf16.mxu0 0
        %806 = vmatpush1.bf16.xpose.msra.mxu0 0
        %807 = vmatprep.subr.bf16.mxu0 0
        %808 = vmatpush1.bf16.xpose.msra.mxu0 0
        %809 = vmatprep.subr.bf16.mxu0 0
        %810 = vmatpush1.bf16.xpose.msra.mxu0 0
        %811 = vmatprep.subr.bf16.mxu0 0
        %812 = vmatpush1.bf16.xpose.msra.mxu0 0
        %813 = vmatprep.subr.bf16.mxu0 0
        %814 = vmatpush1.bf16.xpose.msra.mxu0 0
        %815 = vmatprep.subr.bf16.mxu0 0
        %816 = vmatpush1.bf16.xpose.msra.mxu0 0
        %817 = vmatprep.subr.bf16.mxu0 0
        %818 = vmatpush1.bf16.xpose.msra.mxu0 0
        %819 = vmatprep.subr.bf16.mxu0 0
        %820 = vmatpush1.bf16.xpose.msra.mxu0 0
        %821 = vmatprep.subr.bf16.mxu0 0
        %822 = vmatpush1.bf16.xpose.msra.mxu0 0
        %823 = vmatprep.subr.bf16.mxu0 0
        %824 = vmatpush1.bf16.xpose.msra.mxu0 0
        %825 = vmatprep.subr.bf16.mxu0 0
        %826 = vmatpush1.bf16.xpose.msra.mxu0 0
        %827 = vmatprep.mubr.bf16.mxu0 0
        %828 = vmatmul.mubr.bf16.gmra.mrb[0].mxu0 %v794
        %v829 = vpop.f32.mrb[0].mxu0
        %v830 = vadd.f32 0.0, %v829
        %v831 = vpop.f32.mrb[0].mxu0
        %v832 = vpop.f32.mrb[0].mxu0
        %v833 = vadd.f32 0.0, %v832
        %v834 = vpop.f32.mrb[0].mxu0
        %835 = vdwg.mxu0
        %v836 = vmul.f32 %v830, 0.088388346
        %v837 = vmul.f32 %v833, 0.088388346
        %v838 = vld [vmem:[%s2] sm:$0xff]
        %v839 = vld [vmem:[%s2 + $0x8] sm:$0xff]
        %v840 = vadd.f32 %v836, %v838
        %v841 = vadd.f32 %v837, %v839
        %vm842 = vcmask 130048
        %v843 = vsel %vm842, %v840, -inf
        %844 = vmax.xlane.f32.xlu0 %v843
        %v845 = vpop.xlane.xlu0 %844
        %v846 = vsel %vm842, %v841, -inf
        %847 = vmax.xlane.f32.xlu0 %v846
        %v848 = vpop.xlane.xlu0 %847
        %v849 = vsub.f32 %v840, %v845
        %v850 = vsub.f32 %v841, %v848
        %v851 = vmul.f32 %v849, 1.442695
        %v852 = vpow.pop %v851
        %v853 = vmul.f32 %v850, 1.442695
        %v854 = vpow.pop %v853
        %v855 = vsel %vm842, %v852, 0.0
        %856 = vadd.xlane.f32.xlu0 %v855
        %v857 = vpop.xlane.xlu0 %856
        %v858 = vsel %vm842, %v854, 0.0
        %859 = vadd.xlane.f32.xlu0 %v858
        %v860 = vpop.xlane.xlu0 %859
        %v861 = vrcp.pop %v857
        %v862 = vrcp.pop %v860
        %v863 = vmul.f32 %v852, %v861
        %v864 = vmul.f32 %v854, %v862
        %v865 = vpack.c.bf16 %v864, %v863
        %v867 = vsel %vm842, %v865, 0
        %869 = vmatprep.subr.bf16.mxu0 0
        %870 = vmatpush1.bf16.msra.mxu0 %v793
        %871 = vmatprep.subr.bf16.mxu0 0
        %872 = vmatpush1.bf16.msra.mxu0 0
        %873 = vmatprep.subr.bf16.mxu0 0
        %874 = vmatpush1.bf16.msra.mxu0 0
        %875 = vmatprep.subr.bf16.mxu0 0
        %876 = vmatpush1.bf16.msra.mxu0 0
        %877 = vmatprep.subr.bf16.mxu0 0
        %878 = vmatpush1.bf16.msra.mxu0 0
        %879 = vmatprep.subr.bf16.mxu0 0
        %880 = vmatpush1.bf16.msra.mxu0 0
        %881 = vmatprep.subr.bf16.mxu0 0
        %882 = vmatpush1.bf16.msra.mxu0 0
        %883 = vmatprep.subr.bf16.mxu0 0
        %884 = vmatpush1.bf16.msra.mxu0 0
        %885 = vmatprep.subr.bf16.mxu0 0
        %886 = vmatpush1.bf16.msra.mxu0 0
        %887 = vmatprep.subr.bf16.mxu0 0
        %888 = vmatpush1.bf16.msra.mxu0 0
        %889 = vmatprep.subr.bf16.mxu0 0
        %890 = vmatpush1.bf16.msra.mxu0 0
        %891 = vmatprep.subr.bf16.mxu0 0
        %892 = vmatpush1.bf16.msra.mxu0 0
        %893 = vmatprep.subr.bf16.mxu0 0
        %894 = vmatpush1.bf16.msra.mxu0 0
        %895 = vmatprep.subr.bf16.mxu0 0
        %896 = vmatpush1.bf16.msra.mxu0 0
        %897 = vmatprep.subr.bf16.mxu0 0
        %898 = vmatpush1.bf16.msra.mxu0 0
        %899 = vmatprep.subr.bf16.mxu0 0
        %900 = vmatpush1.bf16.msra.mxu0 0
        %901 = vmatprep.mubr.bf16.mxu0 0
        %902 = vmatmul.mubr.bf16.gmra.mrb[0].mxu0 %v867
        %v903 = vpop.f32.mrb[0].mxu0
        %v904 = vadd.f32 0.0, %v903
        %v905 = vpop.f32.mrb[0].mxu0
        %v906 = vpop.f32.mrb[0].mxu0
        %v907 = vadd.f32 0.0, %v906
        %v908 = vpop.f32.mrb[0].mxu0
        %909 = vdwg.mxu0
        %v910 = vadd.f32 %v791, %v904
        %v911 = vadd.f32 %v792, %v907
        %v912 = vpack.c.bf16 %v911, %v910
        %v913 = vld [vmem:[%s538] sm:$0xf]
        %v914 = vld [vmem:[%s538 + $0x4] sm:$0xf]
        %v915 = vld [vmem:[%s538 + $0x8] sm:$0xf]
        %v916 = vld [vmem:[%s538 + $0xc] sm:$0xf]
        %v917 = vld [vmem:[%s538 + $0x10] sm:$0xf]
        %v918 = vld [vmem:[%s538 + $0x14] sm:$0xf]
        %v919 = vld [vmem:[%s538 + $0x18] sm:$0xf]
        %v920 = vld [vmem:[%s538 + $0x1c] sm:$0xf]
        %v921 = vld [vmem:[%s538 + $0x20] sm:$0xf]
        %v922 = vld [vmem:[%s538 + $0x24] sm:$0xf]
        %v923 = vld [vmem:[%s538 + $0x28] sm:$0xf]
        %v924 = vld [vmem:[%s538 + $0x2c] sm:$0xf]
        %v925 = vld [vmem:[%s538 + $0x30] sm:$0xf]
        %v926 = vld [vmem:[%s538 + $0x34] sm:$0xf]
        %v927 = vld [vmem:[%s538 + $0x38] sm:$0xf]
        %v928 = vld [vmem:[%s538 + $0x3c] sm:$0xf]
        %v929 = vlaneseq
        %v930 = vshrl.u32 %v929, 7
        %v931 = vsub.s32 0, %v930
        %v932 = vrot.slane %v558, %v931
        %v949 = vunpack.c.l.b16 %v913
        %v950 = vunpack.c.l.b16 %v914
        %v951 = vunpack.c.l.b16 %v915
        %v952 = vunpack.c.l.b16 %v916
        %v953 = vunpack.c.l.b16 %v917
        %v954 = vunpack.c.l.b16 %v918
        %v955 = vunpack.c.l.b16 %v919
        %v956 = vunpack.c.l.b16 %v920
        %v957 = vunpack.c.l.b16 %v921
        %v958 = vunpack.c.l.b16 %v922
        %v959 = vunpack.c.l.b16 %v923
        %v960 = vunpack.c.l.b16 %v924
        %v961 = vunpack.c.l.b16 %v925
        %v962 = vunpack.c.l.b16 %v926
        %v963 = vunpack.c.l.b16 %v927
        %v964 = vunpack.c.l.b16 %v928
        %v965 = vpack.c.b16 %v950, %v949
        %v966 = vpack.c.b16 %v952, %v951
        %v967 = vpack.c.b16 %v954, %v953
        %v968 = vpack.c.b16 %v956, %v955
        %v969 = vpack.c.b16 %v958, %v957
        %v970 = vpack.c.b16 %v960, %v959
        %v971 = vpack.c.b16 %v962, %v961
        %v972 = vpack.c.b16 %v964, %v963
        %981 = vmatprep.subr.bf16.mxu0 0
        %982 = vmatpush1.bf16.msra.mxu0 %v965
        %983 = vmatprep.subr.bf16.mxu0 0
        %984 = vmatpush1.bf16.msra.mxu0 %v966
        %985 = vmatprep.subr.bf16.mxu0 0
        %986 = vmatpush1.bf16.msra.mxu0 %v967
        %987 = vmatprep.subr.bf16.mxu0 0
        %988 = vmatpush1.bf16.msra.mxu0 %v968
        %989 = vmatprep.subr.bf16.mxu0 0
        %990 = vmatpush1.bf16.msra.mxu0 %v969
        %991 = vmatprep.subr.bf16.mxu0 0
        %992 = vmatpush1.bf16.msra.mxu0 %v970
        %993 = vmatprep.subr.bf16.mxu0 0
        %994 = vmatpush1.bf16.msra.mxu0 %v971
        %995 = vmatprep.subr.bf16.mxu0 0
        %996 = vmatpush1.bf16.msra.mxu0 %v972
        %997 = vmatprep.subr.bf16.mxu0 0
        %998 = vmatpush1.bf16.msra.mxu0 0
        %999 = vmatprep.subr.bf16.mxu0 0
        %1000 = vmatpush1.bf16.msra.mxu0 0
        %1001 = vmatprep.subr.bf16.mxu0 0
        %1002 = vmatpush1.bf16.msra.mxu0 0
        %1003 = vmatprep.subr.bf16.mxu0 0
        %1004 = vmatpush1.bf16.msra.mxu0 0
        %1005 = vmatprep.subr.bf16.mxu0 0
        %1006 = vmatpush1.bf16.msra.mxu0 0
        %1007 = vmatprep.subr.bf16.mxu0 0
        %1008 = vmatpush1.bf16.msra.mxu0 0
        %1009 = vmatprep.subr.bf16.mxu0 0
        %1010 = vmatpush1.bf16.msra.mxu0 0
        %1011 = vmatprep.subr.bf16.mxu0 0
        %1012 = vmatpush1.bf16.msra.mxu0 0
        %1013 = vmatprep.mubr.bf16.mxu0 0
        %1014 = vmatmul.mubr.bf16.gmra.mrb[0].mxu0 %v912
        %v1015 = vpop.f32.mrb[0].mxu0
        %v1016 = vadd.f32 %v932, %v1015
        %v1017 = vpop.f32.mrb[0].mxu0
        %v1018 = vpop.f32.mrb[0].mxu0
        %v1019 = vadd.f32 %v932, %v1018
        %v1020 = vpop.f32.mrb[0].mxu0
        %1021 = vdwg.mxu0
        %1022 = vst [vmem:[%s547] sm:$0xff] %v1016
        %1023 = vst [vmem:[%s547 + $0x8] sm:$0xff] %v1019
        %v1024 = vld [vmem:[%s3] sm:$0x3]
        %v1026 = vsel %vm842, %v1024, 0
        %1028 = vmatprep.subr.mxu0 0.0
        %1029 = vmatpush1.msra.mxu0 %v910
        %1030 = vmatprep.subr.mxu0 0.0
        %1031 = vmatpush1.msra.mxu0 %v911
        %1032 = vmatprep.subr.mxu0 0.0
        %1033 = vmatpush1.msra.mxu0 0.0
        %1034 = vmatprep.subr.mxu0 0.0
        %1035 = vmatpush1.msra.mxu0 0.0
        %1036 = vmatprep.subr.mxu0 0.0
        %1037 = vmatpush1.msra.mxu0 0.0
        %1038 = vmatprep.subr.mxu0 0.0
        %1039 = vmatpush1.msra.mxu0 0.0
        %1040 = vmatprep.subr.mxu0 0.0
        %1041 = vmatpush1.msra.mxu0 0.0
        %1042 = vmatprep.subr.mxu0 0.0
        %1043 = vmatpush1.msra.mxu0 0.0
        %1044 = vmatprep.subr.mxu0 0.0
        %1045 = vmatpush1.msra.mxu0 0.0
        %1046 = vmatprep.subr.mxu0 0.0
        %1047 = vmatpush1.msra.mxu0 0.0
        %1048 = vmatprep.subr.mxu0 0.0
        %1049 = vmatpush1.msra.mxu0 0.0
        %1050 = vmatprep.subr.mxu0 0.0
        %1051 = vmatpush1.msra.mxu0 0.0
        %1052 = vmatprep.subr.mxu0 0.0
        %1053 = vmatpush1.msra.mxu0 0.0
        %1054 = vmatprep.subr.mxu0 0.0
        %1055 = vmatpush1.msra.mxu0 0.0
        %1056 = vmatprep.subr.mxu0 0.0
        %1057 = vmatpush1.msra.mxu0 0.0
        %1058 = vmatprep.subr.mxu0 0.0
        %1059 = vmatpush1.msra.mxu0 0.0
        %1060 = vmatprep.subr.mxu0 0.0
        %1061 = vmatpush1.msra.mxu0 0.0
        %1062 = vmatprep.subr.mxu0 0.0
        %1063 = vmatpush1.msra.mxu0 0.0
        %1064 = vmatprep.subr.mxu0 0.0
        %1065 = vmatpush1.msra.mxu0 0.0
        %1066 = vmatprep.subr.mxu0 0.0
        %1067 = vmatpush1.msra.mxu0 0.0
        %1068 = vmatprep.subr.mxu0 0.0
        %1069 = vmatpush1.msra.mxu0 0.0
        %1070 = vmatprep.subr.mxu0 0.0
        %1071 = vmatpush1.msra.mxu0 0.0
        %1072 = vmatprep.subr.mxu0 0.0
        %1073 = vmatpush1.msra.mxu0 0.0
        %1074 = vmatprep.subr.mxu0 0.0
        %1075 = vmatpush1.msra.mxu0 0.0
        %1076 = vmatprep.subr.mxu0 0.0
        %1077 = vmatpush1.msra.mxu0 0.0
        %1078 = vmatprep.subr.mxu0 0.0
        %1079 = vmatpush1.msra.mxu0 0.0
        %1080 = vmatprep.subr.mxu0 0.0
        %1081 = vmatpush1.msra.mxu0 0.0
        %1082 = vmatprep.subr.mxu0 0.0
        %1083 = vmatpush1.msra.mxu0 0.0
        %1084 = vmatprep.subr.mxu0 0.0
        %1085 = vmatpush1.msra.mxu0 0.0
        %1086 = vmatprep.subr.mxu0 0.0
        %1087 = vmatpush1.msra.mxu0 0.0
        %1088 = vmatprep.subr.mxu0 0.0
        %1089 = vmatpush1.msra.mxu0 0.0
        %1090 = vmatprep.subr.mxu0 0.0
        %1091 = vmatpush1.msra.mxu0 0.0
        %1092 = vmatprep.mubr.f32.mxu0 0.0
        %1093 = vmatmul.mubr.f32.gmra.mrb[0].mxu0 %v1026
        %v1094 = vpop.f32.mrb[0].mxu0
        %v1095 = vadd.f32 0.0, %v1094
        %v1096 = vpop.f32.mrb[0].mxu0
        %1097 = vdwg.mxu0
        %v1098 = vpack.c.bf16 %v1095, %v1095
        %v1099 = vld [vmem:[%s434] sm:$0xf]
        %v1100 = vld [vmem:[%s434 + $0x4] sm:$0xf]
        %v1101 = vld [vmem:[%s434 + $0x8] sm:$0xf]
        %v1102 = vld [vmem:[%s434 + $0xc] sm:$0xf]
        %v1103 = vld [vmem:[%s434 + $0x10] sm:$0xf]
        %v1104 = vld [vmem:[%s434 + $0x14] sm:$0xf]
        %v1105 = vld [vmem:[%s434 + $0x18] sm:$0xf]
        %v1106 = vld [vmem:[%s434 + $0x1c] sm:$0xf]
        %v1107 = vld [vmem:[%s434 + $0x20] sm:$0xf]
        %v1108 = vld [vmem:[%s434 + $0x24] sm:$0xf]
        %v1109 = vld [vmem:[%s434 + $0x28] sm:$0xf]
        %v1110 = vld [vmem:[%s434 + $0x2c] sm:$0xf]
        %v1111 = vld [vmem:[%s434 + $0x30] sm:$0xf]
        %v1112 = vld [vmem:[%s434 + $0x34] sm:$0xf]
        %v1113 = vld [vmem:[%s434 + $0x38] sm:$0xf]
        %v1114 = vld [vmem:[%s434 + $0x3c] sm:$0xf]
        %v1115 = vlaneseq
        %v1116 = vshrl.u32 %v1115, 7
        %v1117 = vsub.s32 1, %v1116
        %v1118 = vrot.slane %v558, %v1117
        %v1135 = vunpack.c.l.b16 %v1099
        %v1136 = vunpack.c.l.b16 %v1100
        %v1137 = vunpack.c.l.b16 %v1101
        %v1138 = vunpack.c.l.b16 %v1102
        %v1139 = vunpack.c.l.b16 %v1103
        %v1140 = vunpack.c.l.b16 %v1104
        %v1141 = vunpack.c.l.b16 %v1105
        %v1142 = vunpack.c.l.b16 %v1106
        %v1143 = vunpack.c.l.b16 %v1107
        %v1144 = vunpack.c.l.b16 %v1108
        %v1145 = vunpack.c.l.b16 %v1109
        %v1146 = vunpack.c.l.b16 %v1110
        %v1147 = vunpack.c.l.b16 %v1111
        %v1148 = vunpack.c.l.b16 %v1112
        %v1149 = vunpack.c.l.b16 %v1113
        %v1150 = vunpack.c.l.b16 %v1114
        %v1151 = vpack.c.b16 %v1136, %v1135
        %v1152 = vpack.c.b16 %v1138, %v1137
        %v1153 = vpack.c.b16 %v1140, %v1139
        %v1154 = vpack.c.b16 %v1142, %v1141
        %v1155 = vpack.c.b16 %v1144, %v1143
        %v1156 = vpack.c.b16 %v1146, %v1145
        %v1157 = vpack.c.b16 %v1148, %v1147
        %v1158 = vpack.c.b16 %v1150, %v1149
        %1167 = vmatprep.subr.bf16.mxu0 0
        %1168 = vmatpush1.bf16.msra.mxu0 %v1151
        %1169 = vmatprep.subr.bf16.mxu0 0
        %1170 = vmatpush1.bf16.msra.mxu0 %v1152
        %1171 = vmatprep.subr.bf16.mxu0 0
        %1172 = vmatpush1.bf16.msra.mxu0 %v1153
        %1173 = vmatprep.subr.bf16.mxu0 0
        %1174 = vmatpush1.bf16.msra.mxu0 %v1154
        %1175 = vmatprep.subr.bf16.mxu0 0
        %1176 = vmatpush1.bf16.msra.mxu0 %v1155
        %1177 = vmatprep.subr.bf16.mxu0 0
        %1178 = vmatpush1.bf16.msra.mxu0 %v1156
        %1179 = vmatprep.subr.bf16.mxu0 0
        %1180 = vmatpush1.bf16.msra.mxu0 %v1157
        %1181 = vmatprep.subr.bf16.mxu0 0
        %1182 = vmatpush1.bf16.msra.mxu0 %v1158
        %1183 = vmatprep.subr.bf16.mxu0 0
        %1184 = vmatpush1.bf16.msra.mxu0 0
        %1185 = vmatprep.subr.bf16.mxu0 0
        %1186 = vmatpush1.bf16.msra.mxu0 0
        %1187 = vmatprep.subr.bf16.mxu0 0
        %1188 = vmatpush1.bf16.msra.mxu0 0
        %1189 = vmatprep.subr.bf16.mxu0 0
        %1190 = vmatpush1.bf16.msra.mxu0 0
        %1191 = vmatprep.subr.bf16.mxu0 0
        %1192 = vmatpush1.bf16.msra.mxu0 0
        %1193 = vmatprep.subr.bf16.mxu0 0
        %1194 = vmatpush1.bf16.msra.mxu0 0
        %1195 = vmatprep.subr.bf16.mxu0 0
        %1196 = vmatpush1.bf16.msra.mxu0 0
        %1197 = vmatprep.subr.bf16.mxu0 0
        %1198 = vmatpush1.bf16.msra.mxu0 0
        %1199 = vmatprep.mubr.bf16.mxu0 0
        %1200 = vmatmul.mubr.bf16.gmra.mrb[0].mxu0 %v1098
        %v1201 = vpop.f32.mrb[0].mxu0
        %v1202 = vadd.f32 %v1118, %v1201
        %v1203 = vpop.f32.mrb[0].mxu0
        %v1204 = vpop.f32.mrb[0].mxu0
        %v1205 = vpop.f32.mrb[0].mxu0
        %1206 = vdwg.mxu0
        %1207 = vst [vmem:[%s551] sm:$0x3] %v1202
        %p1208 = scmp.lt.s32.totalorder %s26, 2
        %s1209 = scalar_select %p1208, %s26, 2
        %s1210 = smul.addr %s1209, 2
        %s1211 = smul.addr %s1210, 8
        %s1212 = scalar_lea.vmem %s10, %s1211
        %p1213 = scmp.lt.s32.totalorder %s26, 2
        %s1214 = scalar_select %p1213, %s26, 2
        %s1215 = smul.addr %s1214, 2
        %s1216 = scalar_lea.vmem %s11, %s1215
        // Predicated region
        $region65: #{_device_forward.1} parent=59 // pred_check
          %p1217 = pneg %p294
        $region66: #{_device_forward.1} parent=59 // pred_check_branch
          %1219 = sbr.rel (%p1217) target = $region68
        $region67: #{_device_forward.1} parent=59 // pred_region
          _
        $region68: #{_device_forward.1} parent=59 // pred_fallthru
          _
        // Predicated region
        $region69: #{_device_forward.1} parent=59 // pred_check
          %p1220 = pneg %p320
        $region70: #{_device_forward.1} parent=59 // pred_check_branch
          %1222 = sbr.rel (%p1220) target = $region72
        $region71: #{_device_forward.1} parent=59 // pred_region
          _
        $region72: #{_device_forward.1} parent=59 // pred_fallthru
          _
      $region60: #{_device_forward.1} parent=5 // pred_fallthru
        _
      %p1223 = scmp.le.s32.totalorder 2, %s21
      // Predicated region
      $region73: #{_device_forward.1} parent=5 // pred_check
        %p1224 = pneg %p1223
      $region74: #{_device_forward.1} parent=5 // pred_check_branch
        %1226 = sbr.rel (%p1224) target = $region76
      $region75: #{_device_forward.1} parent=5 // pred_region
        %s1227 = ssub.s32 %s21, 2
        // Predicated region
        $region77: #{_device_forward.1} parent=75 // pred_check
          %p1228 = pneg %p300
        $region78: #{_device_forward.1} parent=75 // pred_check_branch
          %1230 = sbr.rel (%p1228) target = $region80
        $region79: #{_device_forward.1} parent=75 // pred_region
          %p1231 = scmp.lt.s32.totalorder %s27, 2
          %s1232 = scalar_select %p1231, %s27, 2
          %s1233 = smul.addr %s1232, 2
          %s1234 = smul.addr %s1233, 8
          %s1235 = scalar_lea.vmem %s10, %s1234
        $region80: #{_device_forward.1} parent=75 // pred_fallthru
          _
        // Predicated region
        $region81: #{_device_forward.1} parent=75 // pred_check
          %p1236 = pneg %p326
        $region82: #{_device_forward.1} parent=75 // pred_check_branch
          %1238 = sbr.rel (%p1236) target = $region84
        $region83: #{_device_forward.1} parent=75 // pred_region
          %p1239 = scmp.lt.s32.totalorder %s27, 2
          %s1240 = scalar_select %p1239, %s27, 2
          %s1241 = smul.addr %s1240, 2
          %s1242 = scalar_lea.vmem %s11, %s1241
        $region84: #{_device_forward.1} parent=75 // pred_fallthru
          _
      $region76: #{_device_forward.1} parent=5 // pred_fallthru
        _
    $region6: #{_device_forward.1} parent=1 // loop_footer
      %s25 = sadd.s32 1, %s21
    $region7: #{_device_forward.1} parent=1 // loop_footer_branch
      %20 = sbr.rel target = $region3
    $region8: #{_device_forward.1} parent=1 // loop_exit
      _
    %1243 = vsyncpa [#allocation3], 1
    %s1244 = scalar_lea.sflag [#allocation3], 1
    %1245 = vsyncpa %s1244, 1

</llo_original>
